<compile_context>
chip_gen: v7x
topology: tpu7x:2x2x1
jax: 0.10.0
libtpu: 0.0.40
codegen_flags: <defaults>
</compile_context>

<pallas_src>
import jax
import jax.numpy as jnp
from jax.experimental import pallas as pl
from jax.experimental.pallas import tpu as pltpu

# ----------------------------- config (small, synthetic) -----------------------------
NUM_CHANNELS = [32, 32, 32]   # all equal (required by torch.cat in the reference forward)
L = len(NUM_CHANNELS)
B, T = 2, 8
C = NUM_CHANNELS[0]
CP = 128                      # lane-dense padded channel width (vreg lane count)
N = B * T

_VMEM = pl.BlockSpec(memory_space=pltpu.MemorySpace.VMEM)


# ============================== Pallas kernel =========================================
def inference_network_kernel(x_ref, eps_ref, w_enc_ref, b_enc_ref,
                             w_head_ref, b_head_ref, out_ref):
    """Fused forward over all L EncodeBlocks (static, fully unrolled level loop).

    x_ref     : (L, N, CP)      per-level inputs (channel-last, zero-padded lanes)
    eps_ref   : (L, N, CP)      std-normal noise for the reparameterized samples
    w_enc_ref : (L, 2, CP, CP)  [l,0] = W1_l^T, [l,1] = W2_l^T (zeros for l==0)
    b_enc_ref : (L, 2, 1, CP)
    w_head_ref: (L, CP, 2*CP)   lanes 0:CP = enc_mean^T, lanes CP:2CP = linear3^T
    b_head_ref: (L, 1, 2*CP)
    out_ref   : (L, 2, N, CP)   [l,0] = mean_l, [l,1] = std_l (padded lanes sliced
                                off outside; std pad lanes hold softplus(0)).
    """
    z = None
    for l in range(L):
        x = x_ref[l]

        # e_d = ReLU(x @ W1^T + b1)
        e = jnp.maximum(
            jnp.dot(x, w_enc_ref[l, 0], preferred_element_type=jnp.float32)
            + b_enc_ref[l, 0],
            0.0)

        if l > 0:
            # e = e_d + ReLU(z @ W2^T + b2)   (kept as two dots: ReLUs don't fuse)
            e = e + jnp.maximum(
                jnp.dot(z, w_enc_ref[l, 1], preferred_element_type=jnp.float32)
                + b_enc_ref[l, 1],
                0.0)

        # Fused mean/std head: one (N,CP) x (CP,2CP) MXU pass, split on lanes.
        h = jnp.dot(e, w_head_ref[l], preferred_element_type=jnp.float32) + b_head_ref[l]
        mean = h[:, :CP]
        pre = h[:, CP:]
        softplus = jnp.maximum(pre, 0.0) + jnp.log1p(jnp.exp(-jnp.abs(pre)))
        std = jnp.clip(softplus, 0.001, 5.0)

        out_ref[l, 0] = mean
        out_ref[l, 1] = std

        # z = eps * std + mean  (feeds the next level; padded lanes are exactly 0
        # because eps-pad and mean-pad are 0).
        z = eps_ref[l] * std + mean


# ============================== wrapper / glue ========================================
@jax.jit
def inference_network_forward(params, final_d, d, prior_mean, prior_std, eps):
    """final_d: (B, C, T); d: (L-1, B, C, T); eps: (L, B, T, C).

    prior_mean / prior_std are accepted but unused, exactly like the reference.
    Returns (all_mean, all_std), each (L, B, T, C).
    """
    del prior_mean, prior_std  # unused by the reference forward

    # channel-last, flatten (B,T) -> N rows, zero-pad channels to CP lanes.
    # All of this fuses under the jit with the pallas_call prologue/epilogue.
    x0 = jnp.transpose(final_d, (0, 2, 1)).reshape(1, N, C)
    dd = jnp.transpose(d, (0, 1, 3, 2)).reshape(L - 1, N, C)
    x_all = jnp.concatenate([x0, dd], axis=0).astype(jnp.float32)
    x_all = jnp.pad(x_all, ((0, 0), (0, 0), (0, CP - C)))
    eps_p = jnp.pad(eps.reshape(L, N, C).astype(jnp.float32),
                    ((0, 0), (0, 0), (0, CP - C)))

    out = pl.pallas_call(
        inference_network_kernel,
        out_shape=jax.ShapeDtypeStruct((L, 2, N, CP), jnp.float32),
        in_specs=[_VMEM] * 6,
        out_specs=_VMEM,
    )(x_all, eps_p,
      params['w_enc'], params['b_enc'], params['w_head'], params['b_head'])

    all_mean = out[:, 0, :, :C].reshape(L, B, T, C)
    all_std = out[:, 1, :, :C].reshape(L, B, T, C)
    return all_mean, all_std


# ============================== parameter setup =======================================
def init_params(key):
    """Mirrors EncodeBlock.init_weights: weights ~ U(-0.01, 0.01), biases = 0.

    Weights are stored transposed and zero-padded into the stacked/fused layouts
    the kernel consumes:
      w_enc  (L, 2, CP, CP)   [l,0] = W1^T, [l,1] = W2^T (zeros for l==0)
      w_head (L, CP, 2*CP)    lanes 0:C = enc_mean^T, lanes CP:CP+C = linear3^T
    """
    initrange = 0.01
    keys = jax.random.split(key, 4 * L)
    ki = iter(range(4 * L))

    def uni():
        return jax.random.uniform(keys[next(ki)], (C, C), jnp.float32,
                                  -initrange, initrange)

    w_enc = jnp.zeros((L, 2, CP, CP), jnp.float32)
    w_head = jnp.zeros((L, CP, 2 * CP), jnp.float32)
    for l in range(L):
        w1 = uni()
        w_enc = w_enc.at[l, 0, :C, :C].set(w1.T)
        w2 = uni()                                   # drawn every level for key parity
        if l > 0:
            w_enc = w_enc.at[l, 1, :C, :C].set(w2.T)
        w3 = uni()
        wm = uni()
        w_head = w_head.at[l, :C, :C].set(wm.T)
        w_head = w_head.at[l, :C, CP:CP + C].set(w3.T)

    return dict(
        w_enc=w_enc,
        b_enc=jnp.zeros((L, 2, 1, CP), jnp.float32),
        w_head=w_head,
        b_head=jnp.zeros((L, 1, 2 * CP), jnp.float32),
    )


# ============================== pure-JAX reference ====================================
def _reference_forward(params, final_d, d, eps):
    """Straightforward jnp re-implementation of the PyTorch forward (for checking)."""
    means, stds = [], []
    z = None
    for l in range(L):
        if l == 0:
            x = jnp.transpose(final_d, (0, 2, 1)).reshape(N, C)
        else:
            x = jnp.transpose(d[l - 1], (0, 2, 1)).reshape(N, C)
        w1 = params['w_enc'][l, 0, :C, :C]
        b1 = params['b_enc'][l, 0, 0, :C]
        e = jax.nn.relu(x @ w1 + b1)
        if l > 0:
            w2 = params['w_enc'][l, 1, :C, :C]
            b2 = params['b_enc'][l, 1, 0, :C]
            e = e + jax.nn.relu(z @ w2 + b2)
        wm = params['w_head'][l, :C, :C]
        bm = params['b_head'][l, 0, :C]
        w3 = params['w_head'][l, :C, CP:CP + C]
        b3 = params['b_head'][l, 0, CP:CP + C]
        mean = e @ wm + bm
        std = jnp.clip(jax.nn.softplus(e @ w3 + b3), 0.001, 5.0)
        means.append(mean)
        stds.append(std)
        z = eps[l].reshape(N, C) * std + mean
    return (jnp.stack(means).reshape(L, B, T, C),
            jnp.stack(stds).reshape(L, B, T, C))


# ====================================== main ==========================================
if __name__ == "__main__":
    key = jax.random.PRNGKey(0)
    k_param, k_final, k_d, k_eps = jax.random.split(key, 4)

    params = init_params(k_param)

    # Inputs in the reference layout: (B, C, T) features per level.
    final_d = jax.random.normal(k_final, (B, C, T), jnp.float32)
    d = jax.random.normal(k_d, (L - 1, B, C, T), jnp.float32)
    prior_mean = jnp.zeros((L, B, T, C), jnp.float32)   # unused by forward (as in reference)
    prior_std = jnp.ones((L, B, T, C), jnp.float32)     # unused by forward (as in reference)
    eps = jax.random.normal(k_eps, (L, B, T, C), jnp.float32)

    all_mean, all_std = inference_network_forward(
        params, final_d, d, prior_mean, prior_std, eps)
    jax.block_until_ready((all_mean, all_std))

    # Shape / range sanity.
    assert all_mean.shape == (L, B, T, C)
    assert all_std.shape == (L, B, T, C)
    assert bool(jnp.all(jnp.isfinite(all_mean)))
    assert bool(jnp.all(jnp.isfinite(all_std)))
    assert bool(jnp.all(all_std >= 0.001)) and bool(jnp.all(all_std <= 5.0))

    # Numerical check against a pure-JAX reference of the PyTorch forward.
    ref_mean, ref_std = _reference_forward(params, final_d, d, eps)
    assert bool(jnp.allclose(all_mean, ref_mean, atol=1e-5, rtol=1e-5))
    assert bool(jnp.allclose(all_std, ref_std, atol=1e-5, rtol=1e-5))

    print("KERNEL_OK")
</pallas_src>

<mosaic_0001>
module attributes {stable_mosaic.version = 11 : i64} {
  func.func @inference_network_kernel(%arg0: memref<3x16x128xf32, #tpu.memory_space<vmem>>, %arg1: memref<3x16x128xf32, #tpu.memory_space<vmem>>, %arg2: memref<3x2x128x128xf32, #tpu.memory_space<vmem>>, %arg3: memref<3x2x1x128xf32, #tpu.memory_space<vmem>>, %arg4: memref<3x128x256xf32, #tpu.memory_space<vmem>>, %arg5: memref<3x1x256xf32, #tpu.memory_space<vmem>>, %arg6: memref<3x2x16x128xf32, #tpu.memory_space<vmem>>) attributes {dimension_semantics = [], scalar_prefetch = 0 : i64, scratch_operands = 0 : i64, tpu.core_type = #tpu.core_type<tc>} {
    %c0 = arith.constant 0 : index
    %c0_0 = arith.constant 0 : index
    %c0_1 = arith.constant 0 : index
    %0 = vector.load %arg0[%c0, %c0_0, %c0_1] : memref<3x16x128xf32, #tpu.memory_space<vmem>>, vector<1x16x128xf32>
    %1 = vector.shape_cast %0 : vector<1x16x128xf32> to vector<16x128xf32>
    %c0_2 = arith.constant 0 : index
    %c0_3 = arith.constant 0 : index
    %c0_4 = arith.constant 0 : index
    %c0_5 = arith.constant 0 : index
    %2 = vector.load %arg2[%c0_2, %c0_3, %c0_4, %c0_5] : memref<3x2x128x128xf32, #tpu.memory_space<vmem>>, vector<1x1x128x128xf32>
    %3 = vector.shape_cast %2 : vector<1x1x128x128xf32> to vector<128x128xf32>
    %cst = arith.constant dense<0.000000e+00> : vector<16x128xf32>
    %4 = tpu.matmul %1, %3, %cst {dimension_numbers = #tpu.dot_dimension_numbers<[1], [0], [0], [1], [0, 0, 1, 1], [], []>} : vector<16x128xf32>, vector<128x128xf32>, vector<16x128xf32> -> vector<16x128xf32>
    %c0_6 = arith.constant 0 : index
    %c0_7 = arith.constant 0 : index
    %c0_8 = arith.constant 0 : index
    %c0_9 = arith.constant 0 : index
    %5 = vector.load %arg3[%c0_6, %c0_7, %c0_8, %c0_9] : memref<3x2x1x128xf32, #tpu.memory_space<vmem>>, vector<1x1x1x128xf32>
    %6 = vector.shape_cast %5 : vector<1x1x1x128xf32> to vector<1x128xf32>
    %7 = vector.broadcast %6 : vector<1x128xf32> to vector<16x128xf32>
    %8 = arith.addf %4, %7 : vector<16x128xf32>
    %cst_10 = arith.constant 0.000000e+00 : f32
    %9 = vector.broadcast %cst_10 : f32 to vector<16x128xf32>
    %10 = arith.maximumf %8, %9 : vector<16x128xf32>
    %c0_11 = arith.constant 0 : index
    %c0_12 = arith.constant 0 : index
    %c0_13 = arith.constant 0 : index
    %11 = vector.load %arg4[%c0_11, %c0_12, %c0_13] : memref<3x128x256xf32, #tpu.memory_space<vmem>>, vector<1x128x256xf32>
    %12 = vector.shape_cast %11 : vector<1x128x256xf32> to vector<128x256xf32>
    %cst_14 = arith.constant dense<0.000000e+00> : vector<16x256xf32>
    %13 = tpu.matmul %10, %12, %cst_14 {dimension_numbers = #tpu.dot_dimension_numbers<[1], [0], [0], [1], [0, 0, 1, 1], [], []>} : vector<16x128xf32>, vector<128x256xf32>, vector<16x256xf32> -> vector<16x256xf32>
    %c0_15 = arith.constant 0 : index
    %c0_16 = arith.constant 0 : index
    %c0_17 = arith.constant 0 : index
    %14 = vector.load %arg5[%c0_15, %c0_16, %c0_17] : memref<3x1x256xf32, #tpu.memory_space<vmem>>, vector<1x1x256xf32>
    %15 = vector.shape_cast %14 : vector<1x1x256xf32> to vector<1x256xf32>
    %16 = vector.broadcast %15 : vector<1x256xf32> to vector<16x256xf32>
    %17 = arith.addf %13, %16 : vector<16x256xf32>
    %18 = vector.extract_strided_slice %17 {offsets = [0, 0], sizes = [16, 128], strides = [1, 1]} : vector<16x256xf32> to vector<16x128xf32>
    %19 = vector.extract_strided_slice %17 {offsets = [0, 128], sizes = [16, 128], strides = [1, 1]} : vector<16x256xf32> to vector<16x128xf32>
    %cst_18 = arith.constant 0.000000e+00 : f32
    %20 = vector.broadcast %cst_18 : f32 to vector<16x128xf32>
    %21 = arith.maximumf %19, %20 : vector<16x128xf32>
    %22 = math.absf %19 : vector<16x128xf32>
    %cst_19 = arith.constant 0.000000e+00 : f32
    %23 = vector.broadcast %cst_19 : f32 to vector<16x128xf32>
    %24 = arith.subf %23, %22 : vector<16x128xf32>
    %25 = math.exp %24 : vector<16x128xf32>
    %26 = math.log1p %25 : vector<16x128xf32>
    %27 = arith.addf %21, %26 : vector<16x128xf32>
    %cst_20 = arith.constant 1.000000e-03 : f32
    %cst_21 = arith.constant 5.000000e+00 : f32
    %28 = vector.broadcast %cst_20 : f32 to vector<16x128xf32>
    %29 = arith.maximumf %28, %27 : vector<16x128xf32>
    %30 = vector.broadcast %cst_21 : f32 to vector<16x128xf32>
    %31 = arith.minimumf %30, %29 : vector<16x128xf32>
    %c0_22 = arith.constant 0 : index
    %c0_23 = arith.constant 0 : index
    %c0_24 = arith.constant 0 : index
    %c0_25 = arith.constant 0 : index
    %32 = vector.load %arg6[%c0_22, %c0_23, %c0_24, %c0_25] : memref<3x2x16x128xf32, #tpu.memory_space<vmem>>, vector<1x1x16x128xf32>
    %33 = vector.shape_cast %32 : vector<1x1x16x128xf32> to vector<16x128xf32>
    %34 = vector.shape_cast %18 : vector<16x128xf32> to vector<1x1x16x128xf32>
    tpu.vector_store %arg6[%c0_22, %c0_23, %c0_24, %c0_25], %34 {strides = array<i32>} : memref<3x2x16x128xf32, #tpu.memory_space<vmem>>, vector<1x1x16x128xf32>,
    %c0_26 = arith.constant 0 : index
    %c1 = arith.constant 1 : index
    %c0_27 = arith.constant 0 : index
    %c0_28 = arith.constant 0 : index
    %35 = vector.load %arg6[%c0_26, %c1, %c0_27, %c0_28] : memref<3x2x16x128xf32, #tpu.memory_space<vmem>>, vector<1x1x16x128xf32>
    %36 = vector.shape_cast %35 : vector<1x1x16x128xf32> to vector<16x128xf32>
    %37 = vector.shape_cast %31 : vector<16x128xf32> to vector<1x1x16x128xf32>
    tpu.vector_store %arg6[%c0_26, %c1, %c0_27, %c0_28], %37 {strides = array<i32>} : memref<3x2x16x128xf32, #tpu.memory_space<vmem>>, vector<1x1x16x128xf32>,
    %c0_29 = arith.constant 0 : index
    %c0_30 = arith.constant 0 : index
    %c0_31 = arith.constant 0 : index
    %38 = vector.load %arg1[%c0_29, %c0_30, %c0_31] : memref<3x16x128xf32, #tpu.memory_space<vmem>>, vector<1x16x128xf32>
    %39 = vector.shape_cast %38 : vector<1x16x128xf32> to vector<16x128xf32>
    %40 = arith.mulf %39, %31 : vector<16x128xf32>
    %41 = arith.addf %40, %18 : vector<16x128xf32>
    %c1_32 = arith.constant 1 : index
    %c0_33 = arith.constant 0 : index
    %c0_34 = arith.constant 0 : index
    %42 = vector.load %arg0[%c1_32, %c0_33, %c0_34] : memref<3x16x128xf32, #tpu.memory_space<vmem>>, vector<1x16x128xf32>
    %43 = vector.shape_cast %42 : vector<1x16x128xf32> to vector<16x128xf32>
    %c1_35 = arith.constant 1 : index
    %c0_36 = arith.constant 0 : index
    %c0_37 = arith.constant 0 : index
    %c0_38 = arith.constant 0 : index
    %44 = vector.load %arg2[%c1_35, %c0_36, %c0_37, %c0_38] : memref<3x2x128x128xf32, #tpu.memory_space<vmem>>, vector<1x1x128x128xf32>
    %45 = vector.shape_cast %44 : vector<1x1x128x128xf32> to vector<128x128xf32>
    %cst_39 = arith.constant dense<0.000000e+00> : vector<16x128xf32>
    %46 = tpu.matmul %43, %45, %cst_39 {dimension_numbers = #tpu.dot_dimension_numbers<[1], [0], [0], [1], [0, 0, 1, 1], [], []>} : vector<16x128xf32>, vector<128x128xf32>, vector<16x128xf32> -> vector<16x128xf32>
    %c1_40 = arith.constant 1 : index
    %c0_41 = arith.constant 0 : index
    %c0_42 = arith.constant 0 : index
    %c0_43 = arith.constant 0 : index
    %47 = vector.load %arg3[%c1_40, %c0_41, %c0_42, %c0_43] : memref<3x2x1x128xf32, #tpu.memory_space<vmem>>, vector<1x1x1x128xf32>
    %48 = vector.shape_cast %47 : vector<1x1x1x128xf32> to vector<1x128xf32>
    %49 = vector.broadcast %48 : vector<1x128xf32> to vector<16x128xf32>
    %50 = arith.addf %46, %49 : vector<16x128xf32>
    %cst_44 = arith.constant 0.000000e+00 : f32
    %51 = vector.broadcast %cst_44 : f32 to vector<16x128xf32>
    %52 = arith.maximumf %50, %51 : vector<16x128xf32>
    %c1_45 = arith.constant 1 : index
    %c1_46 = arith.constant 1 : index
    %c0_47 = arith.constant 0 : index
    %c0_48 = arith.constant 0 : index
    %53 = vector.load %arg2[%c1_45, %c1_46, %c0_47, %c0_48] : memref<3x2x128x128xf32, #tpu.memory_space<vmem>>, vector<1x1x128x128xf32>
    %54 = vector.shape_cast %53 : vector<1x1x128x128xf32> to vector<128x128xf32>
    %cst_49 = arith.constant dense<0.000000e+00> : vector<16x128xf32>
    %55 = tpu.matmul %41, %54, %cst_49 {dimension_numbers = #tpu.dot_dimension_numbers<[1], [0], [0], [1], [0, 0, 1, 1], [], []>} : vector<16x128xf32>, vector<128x128xf32>, vector<16x128xf32> -> vector<16x128xf32>
    %c1_50 = arith.constant 1 : index
    %c1_51 = arith.constant 1 : index
    %c0_52 = arith.constant 0 : index
    %c0_53 = arith.constant 0 : index
    %56 = vector.load %arg3[%c1_50, %c1_51, %c0_52, %c0_53] : memref<3x2x1x128xf32, #tpu.memory_space<vmem>>, vector<1x1x1x128xf32>
    %57 = vector.shape_cast %56 : vector<1x1x1x128xf32> to vector<1x128xf32>
    %58 = vector.broadcast %57 : vector<1x128xf32> to vector<16x128xf32>
    %59 = arith.addf %55, %58 : vector<16x128xf32>
    %cst_54 = arith.constant 0.000000e+00 : f32
    %60 = vector.broadcast %cst_54 : f32 to vector<16x128xf32>
    %61 = arith.maximumf %59, %60 : vector<16x128xf32>
    %62 = arith.addf %52, %61 : vector<16x128xf32>
    %c1_55 = arith.constant 1 : index
    %c0_56 = arith.constant 0 : index
    %c0_57 = arith.constant 0 : index
    %63 = vector.load %arg4[%c1_55, %c0_56, %c0_57] : memref<3x128x256xf32, #tpu.memory_space<vmem>>, vector<1x128x256xf32>
    %64 = vector.shape_cast %63 : vector<1x128x256xf32> to vector<128x256xf32>
    %cst_58 = arith.constant dense<0.000000e+00> : vector<16x256xf32>
    %65 = tpu.matmul %62, %64, %cst_58 {dimension_numbers = #tpu.dot_dimension_numbers<[1], [0], [0], [1], [0, 0, 1, 1], [], []>} : vector<16x128xf32>, vector<128x256xf32>, vector<16x256xf32> -> vector<16x256xf32>
    %c1_59 = arith.constant 1 : index
    %c0_60 = arith.constant 0 : index
    %c0_61 = arith.constant 0 : index
    %66 = vector.load %arg5[%c1_59, %c0_60, %c0_61] : memref<3x1x256xf32, #tpu.memory_space<vmem>>, vector<1x1x256xf32>
    %67 = vector.shape_cast %66 : vector<1x1x256xf32> to vector<1x256xf32>
    %68 = vector.broadcast %67 : vector<1x256xf32> to vector<16x256xf32>
    %69 = arith.addf %65, %68 : vector<16x256xf32>
    %70 = vector.extract_strided_slice %69 {offsets = [0, 0], sizes = [16, 128], strides = [1, 1]} : vector<16x256xf32> to vector<16x128xf32>
    %71 = vector.extract_strided_slice %69 {offsets = [0, 128], sizes = [16, 128], strides = [1, 1]} : vector<16x256xf32> to vector<16x128xf32>
    %cst_62 = arith.constant 0.000000e+00 : f32
    %72 = vector.broadcast %cst_62 : f32 to vector<16x128xf32>
    %73 = arith.maximumf %71, %72 : vector<16x128xf32>
    %74 = math.absf %71 : vector<16x128xf32>
    %cst_63 = arith.constant 0.000000e+00 : f32
    %75 = vector.broadcast %cst_63 : f32 to vector<16x128xf32>
    %76 = arith.subf %75, %74 : vector<16x128xf32>
    %77 = math.exp %76 : vector<16x128xf32>
    %78 = math.log1p %77 : vector<16x128xf32>
    %79 = arith.addf %73, %78 : vector<16x128xf32>
    %cst_64 = arith.constant 1.000000e-03 : f32
    %cst_65 = arith.constant 5.000000e+00 : f32
    %80 = vector.broadcast %cst_64 : f32 to vector<16x128xf32>
    %81 = arith.maximumf %80, %79 : vector<16x128xf32>
    %82 = vector.broadcast %cst_65 : f32 to vector<16x128xf32>
    %83 = arith.minimumf %82, %81 : vector<16x128xf32>
    %c1_66 = arith.constant 1 : index
    %c0_67 = arith.constant 0 : index
    %c0_68 = arith.constant 0 : index
    %c0_69 = arith.constant 0 : index
    %84 = vector.load %arg6[%c1_66, %c0_67, %c0_68, %c0_69] : memref<3x2x16x128xf32, #tpu.memory_space<vmem>>, vector<1x1x16x128xf32>
    %85 = vector.shape_cast %84 : vector<1x1x16x128xf32> to vector<16x128xf32>
    %86 = vector.shape_cast %70 : vector<16x128xf32> to vector<1x1x16x128xf32>
    tpu.vector_store %arg6[%c1_66, %c0_67, %c0_68, %c0_69], %86 {strides = array<i32>} : memref<3x2x16x128xf32, #tpu.memory_space<vmem>>, vector<1x1x16x128xf32>,
    %c1_70 = arith.constant 1 : index
    %c1_71 = arith.constant 1 : index
    %c0_72 = arith.constant 0 : index
    %c0_73 = arith.constant 0 : index
    %87 = vector.load %arg6[%c1_70, %c1_71, %c0_72, %c0_73] : memref<3x2x16x128xf32, #tpu.memory_space<vmem>>, vector<1x1x16x128xf32>
    %88 = vector.shape_cast %87 : vector<1x1x16x128xf32> to vector<16x128xf32>
    %89 = vector.shape_cast %83 : vector<16x128xf32> to vector<1x1x16x128xf32>
    tpu.vector_store %arg6[%c1_70, %c1_71, %c0_72, %c0_73], %89 {strides = array<i32>} : memref<3x2x16x128xf32, #tpu.memory_space<vmem>>, vector<1x1x16x128xf32>,
    %c1_74 = arith.constant 1 : index
    %c0_75 = arith.constant 0 : index
    %c0_76 = arith.constant 0 : index
    %90 = vector.load %arg1[%c1_74, %c0_75, %c0_76] : memref<3x16x128xf32, #tpu.memory_space<vmem>>, vector<1x16x128xf32>
    %91 = vector.shape_cast %90 : vector<1x16x128xf32> to vector<16x128xf32>
    %92 = arith.mulf %91, %83 : vector<16x128xf32>
    %93 = arith.addf %92, %70 : vector<16x128xf32>
    %c2 = arith.constant 2 : index
    %c0_77 = arith.constant 0 : index
    %c0_78 = arith.constant 0 : index
    %94 = vector.load %arg0[%c2, %c0_77, %c0_78] : memref<3x16x128xf32, #tpu.memory_space<vmem>>, vector<1x16x128xf32>
    %95 = vector.shape_cast %94 : vector<1x16x128xf32> to vector<16x128xf32>
    %c2_79 = arith.constant 2 : index
    %c0_80 = arith.constant 0 : index
    %c0_81 = arith.constant 0 : index
    %c0_82 = arith.constant 0 : index
    %96 = vector.load %arg2[%c2_79, %c0_80, %c0_81, %c0_82] : memref<3x2x128x128xf32, #tpu.memory_space<vmem>>, vector<1x1x128x128xf32>
    %97 = vector.shape_cast %96 : vector<1x1x128x128xf32> to vector<128x128xf32>
    %cst_83 = arith.constant dense<0.000000e+00> : vector<16x128xf32>
    %98 = tpu.matmul %95, %97, %cst_83 {dimension_numbers = #tpu.dot_dimension_numbers<[1], [0], [0], [1], [0, 0, 1, 1], [], []>} : vector<16x128xf32>, vector<128x128xf32>, vector<16x128xf32> -> vector<16x128xf32>
    %c2_84 = arith.constant 2 : index
    %c0_85 = arith.constant 0 : index
    %c0_86 = arith.constant 0 : index
    %c0_87 = arith.constant 0 : index
    %99 = vector.load %arg3[%c2_84, %c0_85, %c0_86, %c0_87] : memref<3x2x1x128xf32, #tpu.memory_space<vmem>>, vector<1x1x1x128xf32>
    %100 = vector.shape_cast %99 : vector<1x1x1x128xf32> to vector<1x128xf32>
    %101 = vector.broadcast %100 : vector<1x128xf32> to vector<16x128xf32>
    %102 = arith.addf %98, %101 : vector<16x128xf32>
    %cst_88 = arith.constant 0.000000e+00 : f32
    %103 = vector.broadcast %cst_88 : f32 to vector<16x128xf32>
    %104 = arith.maximumf %102, %103 : vector<16x128xf32>
    %c2_89 = arith.constant 2 : index
    %c1_90 = arith.constant 1 : index
    %c0_91 = arith.constant 0 : index
    %c0_92 = arith.constant 0 : index
    %105 = vector.load %arg2[%c2_89, %c1_90, %c0_91, %c0_92] : memref<3x2x128x128xf32, #tpu.memory_space<vmem>>, vector<1x1x128x128xf32>
    %106 = vector.shape_cast %105 : vector<1x1x128x128xf32> to vector<128x128xf32>
    %cst_93 = arith.constant dense<0.000000e+00> : vector<16x128xf32>
    %107 = tpu.matmul %93, %106, %cst_93 {dimension_numbers = #tpu.dot_dimension_numbers<[1], [0], [0], [1], [0, 0, 1, 1], [], []>} : vector<16x128xf32>, vector<128x128xf32>, vector<16x128xf32> -> vector<16x128xf32>
    %c2_94 = arith.constant 2 : index
    %c1_95 = arith.constant 1 : index
    %c0_96 = arith.constant 0 : index
    %c0_97 = arith.constant 0 : index
    %108 = vector.load %arg3[%c2_94, %c1_95, %c0_96, %c0_97] : memref<3x2x1x128xf32, #tpu.memory_space<vmem>>, vector<1x1x1x128xf32>
    %109 = vector.shape_cast %108 : vector<1x1x1x128xf32> to vector<1x128xf32>
    %110 = vector.broadcast %109 : vector<1x128xf32> to vector<16x128xf32>
    %111 = arith.addf %107, %110 : vector<16x128xf32>
    %cst_98 = arith.constant 0.000000e+00 : f32
    %112 = vector.broadcast %cst_98 : f32 to vector<16x128xf32>
    %113 = arith.maximumf %111, %112 : vector<16x128xf32>
    %114 = arith.addf %104, %113 : vector<16x128xf32>
    %c2_99 = arith.constant 2 : index
    %c0_100 = arith.constant 0 : index
    %c0_101 = arith.constant 0 : index
    %115 = vector.load %arg4[%c2_99, %c0_100, %c0_101] : memref<3x128x256xf32, #tpu.memory_space<vmem>>, vector<1x128x256xf32>
    %116 = vector.shape_cast %115 : vector<1x128x256xf32> to vector<128x256xf32>
    %cst_102 = arith.constant dense<0.000000e+00> : vector<16x256xf32>
    %117 = tpu.matmul %114, %116, %cst_102 {dimension_numbers = #tpu.dot_dimension_numbers<[1], [0], [0], [1], [0, 0, 1, 1], [], []>} : vector<16x128xf32>, vector<128x256xf32>, vector<16x256xf32> -> vector<16x256xf32>
    %c2_103 = arith.constant 2 : index
    %c0_104 = arith.constant 0 : index
    %c0_105 = arith.constant 0 : index
    %118 = vector.load %arg5[%c2_103, %c0_104, %c0_105] : memref<3x1x256xf32, #tpu.memory_space<vmem>>, vector<1x1x256xf32>
    %119 = vector.shape_cast %118 : vector<1x1x256xf32> to vector<1x256xf32>
    %120 = vector.broadcast %119 : vector<1x256xf32> to vector<16x256xf32>
    %121 = arith.addf %117, %120 : vector<16x256xf32>
    %122 = vector.extract_strided_slice %121 {offsets = [0, 0], sizes = [16, 128], strides = [1, 1]} : vector<16x256xf32> to vector<16x128xf32>
    %123 = vector.extract_strided_slice %121 {offsets = [0, 128], sizes = [16, 128], strides = [1, 1]} : vector<16x256xf32> to vector<16x128xf32>
    %cst_106 = arith.constant 0.000000e+00 : f32
    %124 = vector.broadcast %cst_106 : f32 to vector<16x128xf32>
    %125 = arith.maximumf %123, %124 : vector<16x128xf32>
    %126 = math.absf %123 : vector<16x128xf32>
    %cst_107 = arith.constant 0.000000e+00 : f32
    %127 = vector.broadcast %cst_107 : f32 to vector<16x128xf32>
    %128 = arith.subf %127, %126 : vector<16x128xf32>
    %129 = math.exp %128 : vector<16x128xf32>
    %130 = math.log1p %129 : vector<16x128xf32>
    %131 = arith.addf %125, %130 : vector<16x128xf32>
    %cst_108 = arith.constant 1.000000e-03 : f32
    %cst_109 = arith.constant 5.000000e+00 : f32
    %132 = vector.broadcast %cst_108 : f32 to vector<16x128xf32>
    %133 = arith.maximumf %132, %131 : vector<16x128xf32>
    %134 = vector.broadcast %cst_109 : f32 to vector<16x128xf32>
    %135 = arith.minimumf %134, %133 : vector<16x128xf32>
    %c2_110 = arith.constant 2 : index
    %c0_111 = arith.constant 0 : index
    %c0_112 = arith.constant 0 : index
    %c0_113 = arith.constant 0 : index
    %136 = vector.load %arg6[%c2_110, %c0_111, %c0_112, %c0_113] : memref<3x2x16x128xf32, #tpu.memory_space<vmem>>, vector<1x1x16x128xf32>
    %137 = vector.shape_cast %136 : vector<1x1x16x128xf32> to vector<16x128xf32>
    %138 = vector.shape_cast %122 : vector<16x128xf32> to vector<1x1x16x128xf32>
    tpu.vector_store %arg6[%c2_110, %c0_111, %c0_112, %c0_113], %138 {strides = array<i32>} : memref<3x2x16x128xf32, #tpu.memory_space<vmem>>, vector<1x1x16x128xf32>,
    %c2_114 = arith.constant 2 : index
    %c1_115 = arith.constant 1 : index
    %c0_116 = arith.constant 0 : index
    %c0_117 = arith.constant 0 : index
    %139 = vector.load %arg6[%c2_114, %c1_115, %c0_116, %c0_117] : memref<3x2x16x128xf32, #tpu.memory_space<vmem>>, vector<1x1x16x128xf32>
    %140 = vector.shape_cast %139 : vector<1x1x16x128xf32> to vector<16x128xf32>
    %141 = vector.shape_cast %135 : vector<16x128xf32> to vector<1x1x16x128xf32>
    tpu.vector_store %arg6[%c2_114, %c1_115, %c0_116, %c0_117], %141 {strides = array<i32>} : memref<3x2x16x128xf32, #tpu.memory_space<vmem>>, vector<1x1x16x128xf32>,
    return
  }
}

</mosaic_0001>

<llo_original>
// kernel: inference_network_forward.1
$region0: #{inference_network_forward.1}
  #allocation0 [shape = 'u32[]', space=smem, size = 0x4, offset = 0x4, fixed_abs, tag = 'smem constant byte address 0x4 - core index']
  #allocation1 [shape = 'u32[144,128]{1,0:T(1,128)}', space=vmem, size = 0x12000, scoped, tag = 'internal scratch']
  %s0 = inlined_call_operand.vmem [shape: f32[3,16,128], index: 0, kind: input, shape index: {}]
  %s1 = inlined_call_operand.vmem [shape: f32[3,16,128], index: 1, kind: input, shape index: {}]
  %s2 = inlined_call_operand.hbm [shape: f32[3,2,128,128], index: 2, kind: input, shape index: {}]
  %s3 = inlined_call_operand.vmem [shape: f32[3,2,1,128], index: 3, kind: input, shape index: {}]
  %s4 = inlined_call_operand.hbm [shape: f32[3,128,256], index: 4, kind: input, shape index: {}]
  %s5 = inlined_call_operand.vmem [shape: f32[3,1,256], index: 5, kind: input, shape index: {}]
  %s6 = inlined_call_operand.vmem [shape: f32[3,2,16,128], index: 6, kind: output, shape index: {}]
  %s7 = sld [smem:[#allocation0]]
  $region42: #{inference_network_forward.1} parent=0
    _
  %s9 = ssub.s32 1, %s7
  %s10 = scalar_select 0, %s9, %s7
  $region1: #{inference_network_forward.1} parent=0
    #allocation2 [shape = 'u8[393216]{0}', space=vmem, size = 0x60000, scoped, tag = 'input window, operand 2, single buffered']
    #allocation3 [shape = 's32[1]{0}', space=sflag, size = 0x4, scoped, tag = 'scoped memory for inference_network_forward.1']
    #allocation4 [shape = 'u8[393216]{0}', space=vmem, size = 0x60000, scoped, tag = 'input window, operand 4, single buffered']
    #allocation5 [shape = 's32[1]{0}', space=sflag, size = 0x4, scoped, tag = 'scoped memory for inference_network_forward.1']
    %11 = vsyncpa [#allocation3], 0
    %12 = vsyncpa [#allocation5], 0
    // Predicated region
    $region2: #{inference_network_forward.1} parent=1 // pred_check
      _
    $region3: #{inference_network_forward.1} parent=1 // pred_check_branch
      %14 = sbr.rel (0) target = $region5
    $region4: #{inference_network_forward.1} parent=1 // pred_region
      _
    $region5: #{inference_network_forward.1} parent=1 // pred_fallthru
      _
    // Predicated region
    $region6: #{inference_network_forward.1} parent=1 // pred_check
      _
    $region7: #{inference_network_forward.1} parent=1 // pred_check_branch
      %16 = sbr.rel (0) target = $region9
    $region8: #{inference_network_forward.1} parent=1 // pred_region
      _
    $region9: #{inference_network_forward.1} parent=1 // pred_fallthru
      _
    // Predicated region
    $region10: #{inference_network_forward.1} parent=1 // pred_check
      _
    $region11: #{inference_network_forward.1} parent=1 // pred_check_branch
      %18 = sbr.rel (0) target = $region13
    $region12: #{inference_network_forward.1} parent=1 // pred_region
      %s20 = ssub.s32 12288, 12288
      %21 = vsyncadd [#allocation3], %s20
      %s22 = sshll.u32 [#allocation2], 4
      %s23 = int_to_ptr.vmem [resolvable:$true] %s22
      %28 = dma.hbm_to_vmem [thread:$0]  %s2, 12288, %s23, [#allocation3], 128, 128, 8
    $region13: #{inference_network_forward.1} parent=1 // pred_fallthru
      _
    // Predicated region
    $region14: #{inference_network_forward.1} parent=1 // pred_check
      _
    $region15: #{inference_network_forward.1} parent=1 // pred_check_branch
      %30 = sbr.rel (0) target = $region17
    $region16: #{inference_network_forward.1} parent=1 // pred_region
      _
    $region17: #{inference_network_forward.1} parent=1 // pred_fallthru
      _
    // Predicated region
    $region18: #{inference_network_forward.1} parent=1 // pred_check
      _
    $region19: #{inference_network_forward.1} parent=1 // pred_check_branch
      %32 = sbr.rel (0) target = $region21
    $region20: #{inference_network_forward.1} parent=1 // pred_region
      %s34 = ssub.s32 12288, 12288
      %35 = vsyncadd [#allocation5], %s34
      %s36 = sshll.u32 [#allocation4], 4
      %s37 = int_to_ptr.vmem [resolvable:$true] %s36
      %42 = dma.hbm_to_vmem [thread:$0]  %s4, 12288, %s37, [#allocation5], 256, 256, 16
    $region21: #{inference_network_forward.1} parent=1 // pred_fallthru
      _
    // Predicated region
    $region22: #{inference_network_forward.1} parent=1 // pred_check
      _
    $region23: #{inference_network_forward.1} parent=1 // pred_check_branch
      %44 = sbr.rel (0) target = $region25
    $region24: #{inference_network_forward.1} parent=1 // pred_region
      _
    $region25: #{inference_network_forward.1} parent=1 // pred_fallthru
      _
    // Predicated region
    $region26: #{inference_network_forward.1} parent=1 // pred_check
      _
    $region27: #{inference_network_forward.1} parent=1 // pred_check_branch
      %46 = sbr.rel (0) target = $region29
    $region28: #{inference_network_forward.1} parent=1 // pred_region
      %47 = dma.done [#allocation3], 12288
    $region29: #{inference_network_forward.1} parent=1 // pred_fallthru
      _
    // Predicated region
    $region30: #{inference_network_forward.1} parent=1 // pred_check
      _
    $region31: #{inference_network_forward.1} parent=1 // pred_check_branch
      %49 = sbr.rel (0) target = $region33
    $region32: #{inference_network_forward.1} parent=1 // pred_region
      %50 = dma.done [#allocation5], 12288
    $region33: #{inference_network_forward.1} parent=1 // pred_fallthru
      _
    %v51 = vld [vmem:[%s0] sm:$0xff]
    %v52 = vld [vmem:[%s0 + $0x8] sm:$0xff]
    %v53 = vld [vmem:[#allocation2] sm:$0xff]
    %v54 = vld [vmem:[#allocation2 + $0x8] sm:$0xff]
    %v55 = vld [vmem:[#allocation2 + $0x10] sm:$0xff]
    %v56 = vld [vmem:[#allocation2 + $0x18] sm:$0xff]
    %v57 = vld [vmem:[#allocation2 + $0x20] sm:$0xff]
    %v58 = vld [vmem:[#allocation2 + $0x28] sm:$0xff]
    %v59 = vld [vmem:[#allocation2 + $0x30] sm:$0xff]
    %v60 = vld [vmem:[#allocation2 + $0x38] sm:$0xff]
    %v61 = vld [vmem:[#allocation2 + $0x40] sm:$0xff]
    %v62 = vld [vmem:[#allocation2 + $0x48] sm:$0xff]
    %v63 = vld [vmem:[#allocation2 + $0x50] sm:$0xff]
    %v64 = vld [vmem:[#allocation2 + $0x58] sm:$0xff]
    %v65 = vld [vmem:[#allocation2 + $0x60] sm:$0xff]
    %v66 = vld [vmem:[#allocation2 + $0x68] sm:$0xff]
    %v67 = vld [vmem:[#allocation2 + $0x70] sm:$0xff]
    %v68 = vld [vmem:[#allocation2 + $0x78] sm:$0xff]
    %v69 = vld [vmem:[%s3] sm:$0x1]
    %v71 = vlaneseq
    %v72 = vshrl.u32 %v71, 7
    %v73 = vsub.s32 0, %v72
    %v74 = vrot.slane %v69, %v73
    %76 = vmatprep.subr.mxu0 0.0
    %77 = vmatpush1.msra.mxu0 %v53
    %78 = vmatprep.subr.mxu0 0.0
    %79 = vmatpush1.msra.mxu0 %v54
    %80 = vmatprep.subr.mxu0 0.0
    %81 = vmatpush1.msra.mxu0 %v55
    %82 = vmatprep.subr.mxu0 0.0
    %83 = vmatpush1.msra.mxu0 %v56
    %84 = vmatprep.subr.mxu0 0.0
    %85 = vmatpush1.msra.mxu0 %v57
    %86 = vmatprep.subr.mxu0 0.0
    %87 = vmatpush1.msra.mxu0 %v58
    %88 = vmatprep.subr.mxu0 0.0
    %89 = vmatpush1.msra.mxu0 %v59
    %90 = vmatprep.subr.mxu0 0.0
    %91 = vmatpush1.msra.mxu0 %v60
    %92 = vmatprep.subr.mxu0 0.0
    %93 = vmatpush1.msra.mxu0 %v61
    %94 = vmatprep.subr.mxu0 0.0
    %95 = vmatpush1.msra.mxu0 %v62
    %96 = vmatprep.subr.mxu0 0.0
    %97 = vmatpush1.msra.mxu0 %v63
    %98 = vmatprep.subr.mxu0 0.0
    %99 = vmatpush1.msra.mxu0 %v64
    %100 = vmatprep.subr.mxu0 0.0
    %101 = vmatpush1.msra.mxu0 %v65
    %102 = vmatprep.subr.mxu0 0.0
    %103 = vmatpush1.msra.mxu0 %v66
    %104 = vmatprep.subr.mxu0 0.0
    %105 = vmatpush1.msra.mxu0 %v67
    %106 = vmatprep.subr.mxu0 0.0
    %107 = vmatpush1.msra.mxu0 %v68
    %108 = vmatprep.subr.mxu0 0.0
    %109 = vmatpush1.msra.mxu0 0.0
    %110 = vmatprep.subr.mxu0 0.0
    %111 = vmatpush1.msra.mxu0 0.0
    %112 = vmatprep.subr.mxu0 0.0
    %113 = vmatpush1.msra.mxu0 0.0
    %114 = vmatprep.subr.mxu0 0.0
    %115 = vmatpush1.msra.mxu0 0.0
    %116 = vmatprep.subr.mxu0 0.0
    %117 = vmatpush1.msra.mxu0 0.0
    %118 = vmatprep.subr.mxu0 0.0
    %119 = vmatpush1.msra.mxu0 0.0
    %120 = vmatprep.subr.mxu0 0.0
    %121 = vmatpush1.msra.mxu0 0.0
    %122 = vmatprep.subr.mxu0 0.0
    %123 = vmatpush1.msra.mxu0 0.0
    %124 = vmatprep.subr.mxu0 0.0
    %125 = vmatpush1.msra.mxu0 0.0
    %126 = vmatprep.subr.mxu0 0.0
    %127 = vmatpush1.msra.mxu0 0.0
    %128 = vmatprep.subr.mxu0 0.0
    %129 = vmatpush1.msra.mxu0 0.0
    %130 = vmatprep.subr.mxu0 0.0
    %131 = vmatpush1.msra.mxu0 0.0
    %132 = vmatprep.subr.mxu0 0.0
    %133 = vmatpush1.msra.mxu0 0.0
    %134 = vmatprep.subr.mxu0 0.0
    %135 = vmatpush1.msra.mxu0 0.0
    %136 = vmatprep.subr.mxu0 0.0
    %137 = vmatpush1.msra.mxu0 0.0
    %138 = vmatprep.subr.mxu0 0.0
    %139 = vmatpush1.msra.mxu0 0.0
    %140 = vmatprep.mubr.f32.mxu0 0.0
    %141 = vmatmul.mubr.f32.gmra.mrb[0].mxu0 %v51
    %v142 = vpop.f32.mrb[0].mxu0
    %v143 = vadd.f32 %v74, %v142
    %v144 = vpop.f32.mrb[0].mxu0
    %145 = vmatprep.mubr.f32.mxu0 0.0
    %146 = vmatmul.mubr.f32.gmra.mrb[0].mxu0 %v52
    %v147 = vpop.f32.mrb[0].mxu0
    %v148 = vadd.f32 %v74, %v147
    %v149 = vpop.f32.mrb[0].mxu0
    %150 = vdwg.mxu0
    %v151 = vmax.f32 %v143, 0.0
    %v152 = vmax.f32 %v148, 0.0
    %v153 = vld [vmem:[#allocation4] sm:$0xff]
    %v154 = vld [vmem:[#allocation4 + $0x8] sm:$0xff]
    %v155 = vld [vmem:[#allocation4 + $0x10] sm:$0xff]
    %v156 = vld [vmem:[#allocation4 + $0x18] sm:$0xff]
    %v157 = vld [vmem:[#allocation4 + $0x20] sm:$0xff]
    %v158 = vld [vmem:[#allocation4 + $0x28] sm:$0xff]
    %v159 = vld [vmem:[#allocation4 + $0x30] sm:$0xff]
    %v160 = vld [vmem:[#allocation4 + $0x38] sm:$0xff]
    %v161 = vld [vmem:[#allocation4 + $0x40] sm:$0xff]
    %v162 = vld [vmem:[#allocation4 + $0x48] sm:$0xff]
    %v163 = vld [vmem:[#allocation4 + $0x50] sm:$0xff]
    %v164 = vld [vmem:[#allocation4 + $0x58] sm:$0xff]
    %v165 = vld [vmem:[#allocation4 + $0x60] sm:$0xff]
    %v166 = vld [vmem:[#allocation4 + $0x68] sm:$0xff]
    %v167 = vld [vmem:[#allocation4 + $0x70] sm:$0xff]
    %v168 = vld [vmem:[#allocation4 + $0x78] sm:$0xff]
    %v169 = vld [vmem:[#allocation4 + $0x80] sm:$0xff]
    %v170 = vld [vmem:[#allocation4 + $0x88] sm:$0xff]
    %v171 = vld [vmem:[#allocation4 + $0x90] sm:$0xff]
    %v172 = vld [vmem:[#allocation4 + $0x98] sm:$0xff]
    %v173 = vld [vmem:[#allocation4 + $0xa0] sm:$0xff]
    %v174 = vld [vmem:[#allocation4 + $0xa8] sm:$0xff]
    %v175 = vld [vmem:[#allocation4 + $0xb0] sm:$0xff]
    %v176 = vld [vmem:[#allocation4 + $0xb8] sm:$0xff]
    %v177 = vld [vmem:[#allocation4 + $0xc0] sm:$0xff]
    %v178 = vld [vmem:[#allocation4 + $0xc8] sm:$0xff]
    %v179 = vld [vmem:[#allocation4 + $0xd0] sm:$0xff]
    %v180 = vld [vmem:[#allocation4 + $0xd8] sm:$0xff]
    %v181 = vld [vmem:[#allocation4 + $0xe0] sm:$0xff]
    %v182 = vld [vmem:[#allocation4 + $0xe8] sm:$0xff]
    %v183 = vld [vmem:[#allocation4 + $0xf0] sm:$0xff]
    %v184 = vld [vmem:[#allocation4 + $0xf8] sm:$0xff]
    %v185 = vld [vmem:[%s5] sm:$0x3]
    %v187 = vlaneseq
    %v188 = vshrl.u32 %v187, 7
    %v189 = vsub.s32 0, %v188
    %v190 = vrot.slane %v185, %v189
    %v191 = vlaneseq
    %v192 = vshrl.u32 %v191, 7
    %v193 = vsub.s32 1, %v192
    %v194 = vrot.slane %v185, %v193
    %197 = vmatprep.subr.mxu0 %v154
    %198 = vmatpush1.msra.mxu0 %v153
    %199 = vmatprep.subr.mxu0 %v156
    %200 = vmatpush1.msra.mxu0 %v155
    %201 = vmatprep.subr.mxu0 %v158
    %202 = vmatpush1.msra.mxu0 %v157
    %203 = vmatprep.subr.mxu0 %v160
    %204 = vmatpush1.msra.mxu0 %v159
    %205 = vmatprep.subr.mxu0 %v162
    %206 = vmatpush1.msra.mxu0 %v161
    %207 = vmatprep.subr.mxu0 %v164
    %208 = vmatpush1.msra.mxu0 %v163
    %209 = vmatprep.subr.mxu0 %v166
    %210 = vmatpush1.msra.mxu0 %v165
    %211 = vmatprep.subr.mxu0 %v168
    %212 = vmatpush1.msra.mxu0 %v167
    %213 = vmatprep.subr.mxu0 %v170
    %214 = vmatpush1.msra.mxu0 %v169
    %215 = vmatprep.subr.mxu0 %v172
    %216 = vmatpush1.msra.mxu0 %v171
    %217 = vmatprep.subr.mxu0 %v174
    %218 = vmatpush1.msra.mxu0 %v173
    %219 = vmatprep.subr.mxu0 %v176
    %220 = vmatpush1.msra.mxu0 %v175
    %221 = vmatprep.subr.mxu0 %v178
    %222 = vmatpush1.msra.mxu0 %v177
    %223 = vmatprep.subr.mxu0 %v180
    %224 = vmatpush1.msra.mxu0 %v179
    %225 = vmatprep.subr.mxu0 %v182
    %226 = vmatpush1.msra.mxu0 %v181
    %227 = vmatprep.subr.mxu0 %v184
    %228 = vmatpush1.msra.mxu0 %v183
    %229 = vmatprep.subr.mxu0 0.0
    %230 = vmatpush1.msra.mxu0 0.0
    %231 = vmatprep.subr.mxu0 0.0
    %232 = vmatpush1.msra.mxu0 0.0
    %233 = vmatprep.subr.mxu0 0.0
    %234 = vmatpush1.msra.mxu0 0.0
    %235 = vmatprep.subr.mxu0 0.0
    %236 = vmatpush1.msra.mxu0 0.0
    %237 = vmatprep.subr.mxu0 0.0
    %238 = vmatpush1.msra.mxu0 0.0
    %239 = vmatprep.subr.mxu0 0.0
    %240 = vmatpush1.msra.mxu0 0.0
    %241 = vmatprep.subr.mxu0 0.0
    %242 = vmatpush1.msra.mxu0 0.0
    %243 = vmatprep.subr.mxu0 0.0
    %244 = vmatpush1.msra.mxu0 0.0
    %245 = vmatprep.subr.mxu0 0.0
    %246 = vmatpush1.msra.mxu0 0.0
    %247 = vmatprep.subr.mxu0 0.0
    %248 = vmatpush1.msra.mxu0 0.0
    %249 = vmatprep.subr.mxu0 0.0
    %250 = vmatpush1.msra.mxu0 0.0
    %251 = vmatprep.subr.mxu0 0.0
    %252 = vmatpush1.msra.mxu0 0.0
    %253 = vmatprep.subr.mxu0 0.0
    %254 = vmatpush1.msra.mxu0 0.0
    %255 = vmatprep.subr.mxu0 0.0
    %256 = vmatpush1.msra.mxu0 0.0
    %257 = vmatprep.subr.mxu0 0.0
    %258 = vmatpush1.msra.mxu0 0.0
    %259 = vmatprep.subr.mxu0 0.0
    %260 = vmatpush1.msra.mxu0 0.0
    %261 = vmatprep.mubr.f32.mxu0 0.0
    %262 = vmatmul.mubr.f32.gmra.mrb[0].mxu0 %v151
    %v263 = vpop.f32.mrb[0].mxu0
    %v264 = vadd.f32 %v190, %v263
    %v265 = vpop.f32.mrb[0].mxu0
    %v266 = vadd.f32 %v194, %v265
    %267 = vmatprep.mubr.f32.mxu0 0.0
    %268 = vmatmul.mubr.f32.gmra.mrb[0].mxu0 %v152
    %v269 = vpop.f32.mrb[0].mxu0
    %v270 = vadd.f32 %v190, %v269
    %v271 = vpop.f32.mrb[0].mxu0
    %v272 = vadd.f32 %v194, %v271
    %273 = vdwg.mxu0
    %v274 = vmax.f32 %v266, 0.0
    %v275 = vmax.f32 %v272, 0.0
    %v276 = vand.u32 2147483647, %v266
    %v277 = vand.u32 2147483647, %v272
    %v278 = vsub.f32 0.0, %v276
    %v279 = vsub.f32 0.0, %v277
    %v280 = vmul.f32 %v278, 1.442695
    %v281 = vpow.pop %v280
    %v282 = vmul.f32 %v279, 1.442695
    %v283 = vpow.pop %v282
    %v284 = vadd.f32 %v281, 1.0
    %v285 = vlog2.pop %v284
    %v286 = vmul.f32 %v285, 0.6931472
    %v287 = vmul.f32 -0.5, %v281
    %v288 = vadd.f32 %v287, 1.0
    %v289 = vmul.f32 %v288, %v281
    %v290 = vand.u32 2147483647, %v281
    %vm291 = vcmp.lt.f32.partialorder %v290, 0.0004427343
    %v292 = vsel %vm291, %v289, %v286
    %v293 = vadd.f32 %v283, 1.0
    %v294 = vlog2.pop %v293
    %v295 = vmul.f32 %v294, 0.6931472
    %v296 = vmul.f32 -0.5, %v283
    %v297 = vadd.f32 %v296, 1.0
    %v298 = vmul.f32 %v297, %v283
    %v299 = vand.u32 2147483647, %v283
    %vm300 = vcmp.lt.f32.partialorder %v299, 0.0004427343
    %v301 = vsel %vm300, %v298, %v295
    %v302 = vadd.f32 %v274, %v292
    %v303 = vadd.f32 %v275, %v301
    %v304 = vmax.f32 %v302, 0.001
    %v305 = vmax.f32 %v303, 0.001
    %v306 = vmin.f32 %v304, 5.0
    %v307 = vmin.f32 %v305, 5.0
    %308 = vst [vmem:[%s6] sm:$0xff] %v264
    %309 = vst [vmem:[%s6 + $0x8] sm:$0xff] %v270
    %s310 = scalar_lea.vmem %s6, 16
    %311 = vst [vmem:[%s310] sm:$0xff] %v306
    %312 = vst [vmem:[%s310 + $0x8] sm:$0xff] %v307
    %v313 = vld [vmem:[%s1] sm:$0xff]
    %v314 = vld [vmem:[%s1 + $0x8] sm:$0xff]
    %v315 = vmul.f32 %v313, %v306
    %v316 = vmul.f32 %v314, %v307
    %v317 = vadd.f32 %v315, %v264
    %v318 = vadd.f32 %v316, %v270
    %s319 = scalar_lea.vmem %s0, 16
    %v320 = vld [vmem:[%s319] sm:$0xff]
    %v321 = vld [vmem:[%s319 + $0x8] sm:$0xff]
    %s322 = scalar_lea.vmem [#allocation2], 256
    %v323 = vld [vmem:[%s322] sm:$0xff]
    %v324 = vld [vmem:[%s322 + $0x8] sm:$0xff]
    %v325 = vld [vmem:[%s322 + $0x10] sm:$0xff]
    %v326 = vld [vmem:[%s322 + $0x18] sm:$0xff]
    %v327 = vld [vmem:[%s322 + $0x20] sm:$0xff]
    %v328 = vld [vmem:[%s322 + $0x28] sm:$0xff]
    %v329 = vld [vmem:[%s322 + $0x30] sm:$0xff]
    %v330 = vld [vmem:[%s322 + $0x38] sm:$0xff]
    %v331 = vld [vmem:[%s322 + $0x40] sm:$0xff]
    %v332 = vld [vmem:[%s322 + $0x48] sm:$0xff]
    %v333 = vld [vmem:[%s322 + $0x50] sm:$0xff]
    %v334 = vld [vmem:[%s322 + $0x58] sm:$0xff]
    %v335 = vld [vmem:[%s322 + $0x60] sm:$0xff]
    %v336 = vld [vmem:[%s322 + $0x68] sm:$0xff]
    %v337 = vld [vmem:[%s322 + $0x70] sm:$0xff]
    %v338 = vld [vmem:[%s322 + $0x78] sm:$0xff]
    %s339 = scalar_lea.vmem %s3, 2
    %v340 = vld [vmem:[%s339] sm:$0x1]
    %v342 = vlaneseq
    %v343 = vshrl.u32 %v342, 7
    %v344 = vsub.s32 0, %v343
    %v345 = vrot.slane %v340, %v344
    %347 = vmatprep.subr.mxu0 0.0
    %348 = vmatpush1.msra.mxu0 %v323
    %349 = vmatprep.subr.mxu0 0.0
    %350 = vmatpush1.msra.mxu0 %v324
    %351 = vmatprep.subr.mxu0 0.0
    %352 = vmatpush1.msra.mxu0 %v325
    %353 = vmatprep.subr.mxu0 0.0
    %354 = vmatpush1.msra.mxu0 %v326
    %355 = vmatprep.subr.mxu0 0.0
    %356 = vmatpush1.msra.mxu0 %v327
    %357 = vmatprep.subr.mxu0 0.0
    %358 = vmatpush1.msra.mxu0 %v328
    %359 = vmatprep.subr.mxu0 0.0
    %360 = vmatpush1.msra.mxu0 %v329
    %361 = vmatprep.subr.mxu0 0.0
    %362 = vmatpush1.msra.mxu0 %v330
    %363 = vmatprep.subr.mxu0 0.0
    %364 = vmatpush1.msra.mxu0 %v331
    %365 = vmatprep.subr.mxu0 0.0
    %366 = vmatpush1.msra.mxu0 %v332
    %367 = vmatprep.subr.mxu0 0.0
    %368 = vmatpush1.msra.mxu0 %v333
    %369 = vmatprep.subr.mxu0 0.0
    %370 = vmatpush1.msra.mxu0 %v334
    %371 = vmatprep.subr.mxu0 0.0
    %372 = vmatpush1.msra.mxu0 %v335
    %373 = vmatprep.subr.mxu0 0.0
    %374 = vmatpush1.msra.mxu0 %v336
    %375 = vmatprep.subr.mxu0 0.0
    %376 = vmatpush1.msra.mxu0 %v337
    %377 = vmatprep.subr.mxu0 0.0
    %378 = vmatpush1.msra.mxu0 %v338
    %379 = vmatprep.subr.mxu0 0.0
    %380 = vmatpush1.msra.mxu0 0.0
    %381 = vmatprep.subr.mxu0 0.0
    %382 = vmatpush1.msra.mxu0 0.0
    %383 = vmatprep.subr.mxu0 0.0
    %384 = vmatpush1.msra.mxu0 0.0
    %385 = vmatprep.subr.mxu0 0.0
    %386 = vmatpush1.msra.mxu0 0.0
    %387 = vmatprep.subr.mxu0 0.0
    %388 = vmatpush1.msra.mxu0 0.0
    %389 = vmatprep.subr.mxu0 0.0
    %390 = vmatpush1.msra.mxu0 0.0
    %391 = vmatprep.subr.mxu0 0.0
    %392 = vmatpush1.msra.mxu0 0.0
    %393 = vmatprep.subr.mxu0 0.0
    %394 = vmatpush1.msra.mxu0 0.0
    %395 = vmatprep.subr.mxu0 0.0
    %396 = vmatpush1.msra.mxu0 0.0
    %397 = vmatprep.subr.mxu0 0.0
    %398 = vmatpush1.msra.mxu0 0.0
    %399 = vmatprep.subr.mxu0 0.0
    %400 = vmatpush1.msra.mxu0 0.0
    %401 = vmatprep.subr.mxu0 0.0
    %402 = vmatpush1.msra.mxu0 0.0
    %403 = vmatprep.subr.mxu0 0.0
    %404 = vmatpush1.msra.mxu0 0.0
    %405 = vmatprep.subr.mxu0 0.0
    %406 = vmatpush1.msra.mxu0 0.0
    %407 = vmatprep.subr.mxu0 0.0
    %408 = vmatpush1.msra.mxu0 0.0
    %409 = vmatprep.subr.mxu0 0.0
    %410 = vmatpush1.msra.mxu0 0.0
    %411 = vmatprep.mubr.f32.mxu0 0.0
    %412 = vmatmul.mubr.f32.gmra.mrb[0].mxu0 %v320
    %v413 = vpop.f32.mrb[0].mxu0
    %v414 = vadd.f32 %v345, %v413
    %v415 = vpop.f32.mrb[0].mxu0
    %416 = vmatprep.mubr.f32.mxu0 0.0
    %417 = vmatmul.mubr.f32.gmra.mrb[0].mxu0 %v321
    %v418 = vpop.f32.mrb[0].mxu0
    %v419 = vadd.f32 %v345, %v418
    %v420 = vpop.f32.mrb[0].mxu0
    %421 = vdwg.mxu0
    %v422 = vmax.f32 %v414, 0.0
    %v423 = vmax.f32 %v419, 0.0
    %s424 = scalar_lea.vmem [#allocation2], 384
    %v425 = vld [vmem:[%s424] sm:$0xff]
    %v426 = vld [vmem:[%s424 + $0x8] sm:$0xff]
    %v427 = vld [vmem:[%s424 + $0x10] sm:$0xff]
    %v428 = vld [vmem:[%s424 + $0x18] sm:$0xff]
    %v429 = vld [vmem:[%s424 + $0x20] sm:$0xff]
    %v430 = vld [vmem:[%s424 + $0x28] sm:$0xff]
    %v431 = vld [vmem:[%s424 + $0x30] sm:$0xff]
    %v432 = vld [vmem:[%s424 + $0x38] sm:$0xff]
    %v433 = vld [vmem:[%s424 + $0x40] sm:$0xff]
    %v434 = vld [vmem:[%s424 + $0x48] sm:$0xff]
    %v435 = vld [vmem:[%s424 + $0x50] sm:$0xff]
    %v436 = vld [vmem:[%s424 + $0x58] sm:$0xff]
    %v437 = vld [vmem:[%s424 + $0x60] sm:$0xff]
    %v438 = vld [vmem:[%s424 + $0x68] sm:$0xff]
    %v439 = vld [vmem:[%s424 + $0x70] sm:$0xff]
    %v440 = vld [vmem:[%s424 + $0x78] sm:$0xff]
    %s441 = scalar_lea.vmem %s3, 3
    %v442 = vld [vmem:[%s441] sm:$0x1]
    %v444 = vlaneseq
    %v445 = vshrl.u32 %v444, 7
    %v446 = vsub.s32 0, %v445
    %v447 = vrot.slane %v442, %v446
    %449 = vmatprep.subr.mxu0 0.0
    %450 = vmatpush1.msra.mxu0 %v425
    %451 = vmatprep.subr.mxu0 0.0
    %452 = vmatpush1.msra.mxu0 %v426
    %453 = vmatprep.subr.mxu0 0.0
    %454 = vmatpush1.msra.mxu0 %v427
    %455 = vmatprep.subr.mxu0 0.0
    %456 = vmatpush1.msra.mxu0 %v428
    %457 = vmatprep.subr.mxu0 0.0
    %458 = vmatpush1.msra.mxu0 %v429
    %459 = vmatprep.subr.mxu0 0.0
    %460 = vmatpush1.msra.mxu0 %v430
    %461 = vmatprep.subr.mxu0 0.0
    %462 = vmatpush1.msra.mxu0 %v431
    %463 = vmatprep.subr.mxu0 0.0
    %464 = vmatpush1.msra.mxu0 %v432
    %465 = vmatprep.subr.mxu0 0.0
    %466 = vmatpush1.msra.mxu0 %v433
    %467 = vmatprep.subr.mxu0 0.0
    %468 = vmatpush1.msra.mxu0 %v434
    %469 = vmatprep.subr.mxu0 0.0
    %470 = vmatpush1.msra.mxu0 %v435
    %471 = vmatprep.subr.mxu0 0.0
    %472 = vmatpush1.msra.mxu0 %v436
    %473 = vmatprep.subr.mxu0 0.0
    %474 = vmatpush1.msra.mxu0 %v437
    %475 = vmatprep.subr.mxu0 0.0
    %476 = vmatpush1.msra.mxu0 %v438
    %477 = vmatprep.subr.mxu0 0.0
    %478 = vmatpush1.msra.mxu0 %v439
    %479 = vmatprep.subr.mxu0 0.0
    %480 = vmatpush1.msra.mxu0 %v440
    %481 = vmatprep.subr.mxu0 0.0
    %482 = vmatpush1.msra.mxu0 0.0
    %483 = vmatprep.subr.mxu0 0.0
    %484 = vmatpush1.msra.mxu0 0.0
    %485 = vmatprep.subr.mxu0 0.0
    %486 = vmatpush1.msra.mxu0 0.0
    %487 = vmatprep.subr.mxu0 0.0
    %488 = vmatpush1.msra.mxu0 0.0
    %489 = vmatprep.subr.mxu0 0.0
    %490 = vmatpush1.msra.mxu0 0.0
    %491 = vmatprep.subr.mxu0 0.0
    %492 = vmatpush1.msra.mxu0 0.0
    %493 = vmatprep.subr.mxu0 0.0
    %494 = vmatpush1.msra.mxu0 0.0
    %495 = vmatprep.subr.mxu0 0.0
    %496 = vmatpush1.msra.mxu0 0.0
    %497 = vmatprep.subr.mxu0 0.0
    %498 = vmatpush1.msra.mxu0 0.0
    %499 = vmatprep.subr.mxu0 0.0
    %500 = vmatpush1.msra.mxu0 0.0
    %501 = vmatprep.subr.mxu0 0.0
    %502 = vmatpush1.msra.mxu0 0.0
    %503 = vmatprep.subr.mxu0 0.0
    %504 = vmatpush1.msra.mxu0 0.0
    %505 = vmatprep.subr.mxu0 0.0
    %506 = vmatpush1.msra.mxu0 0.0
    %507 = vmatprep.subr.mxu0 0.0
    %508 = vmatpush1.msra.mxu0 0.0
    %509 = vmatprep.subr.mxu0 0.0
    %510 = vmatpush1.msra.mxu0 0.0
    %511 = vmatprep.subr.mxu0 0.0
    %512 = vmatpush1.msra.mxu0 0.0
    %513 = vmatprep.mubr.f32.mxu0 0.0
    %514 = vmatmul.mubr.f32.gmra.mrb[0].mxu0 %v317
    %v515 = vpop.f32.mrb[0].mxu0
    %v516 = vadd.f32 %v447, %v515
    %v517 = vpop.f32.mrb[0].mxu0
    %518 = vmatprep.mubr.f32.mxu0 0.0
    %519 = vmatmul.mubr.f32.gmra.mrb[0].mxu0 %v318
    %v520 = vpop.f32.mrb[0].mxu0
    %v521 = vadd.f32 %v447, %v520
    %v522 = vpop.f32.mrb[0].mxu0
    %523 = vdwg.mxu0
    %v524 = vmax.f32 %v516, 0.0
    %v525 = vmax.f32 %v521, 0.0
    %v526 = vadd.f32 %v422, %v524
    %v527 = vadd.f32 %v423, %v525
    %s528 = scalar_lea.vmem [#allocation4], 256
    %v529 = vld [vmem:[%s528] sm:$0xff]
    %v530 = vld [vmem:[%s528 + $0x8] sm:$0xff]
    %v531 = vld [vmem:[%s528 + $0x10] sm:$0xff]
    %v532 = vld [vmem:[%s528 + $0x18] sm:$0xff]
    %v533 = vld [vmem:[%s528 + $0x20] sm:$0xff]
    %v534 = vld [vmem:[%s528 + $0x28] sm:$0xff]
    %v535 = vld [vmem:[%s528 + $0x30] sm:$0xff]
    %v536 = vld [vmem:[%s528 + $0x38] sm:$0xff]
    %v537 = vld [vmem:[%s528 + $0x40] sm:$0xff]
    %v538 = vld [vmem:[%s528 + $0x48] sm:$0xff]
    %v539 = vld [vmem:[%s528 + $0x50] sm:$0xff]
    %v540 = vld [vmem:[%s528 + $0x58] sm:$0xff]
    %v541 = vld [vmem:[%s528 + $0x60] sm:$0xff]
    %v542 = vld [vmem:[%s528 + $0x68] sm:$0xff]
    %v543 = vld [vmem:[%s528 + $0x70] sm:$0xff]
    %v544 = vld [vmem:[%s528 + $0x78] sm:$0xff]
    %v545 = vld [vmem:[%s528 + $0x80] sm:$0xff]
    %v546 = vld [vmem:[%s528 + $0x88] sm:$0xff]
    %v547 = vld [vmem:[%s528 + $0x90] sm:$0xff]
    %v548 = vld [vmem:[%s528 + $0x98] sm:$0xff]
    %v549 = vld [vmem:[%s528 + $0xa0] sm:$0xff]
    %v550 = vld [vmem:[%s528 + $0xa8] sm:$0xff]
    %v551 = vld [vmem:[%s528 + $0xb0] sm:$0xff]
    %v552 = vld [vmem:[%s528 + $0xb8] sm:$0xff]
    %v553 = vld [vmem:[%s528 + $0xc0] sm:$0xff]
    %v554 = vld [vmem:[%s528 + $0xc8] sm:$0xff]
    %v555 = vld [vmem:[%s528 + $0xd0] sm:$0xff]
    %v556 = vld [vmem:[%s528 + $0xd8] sm:$0xff]
    %v557 = vld [vmem:[%s528 + $0xe0] sm:$0xff]
    %v558 = vld [vmem:[%s528 + $0xe8] sm:$0xff]
    %v559 = vld [vmem:[%s528 + $0xf0] sm:$0xff]
    %v560 = vld [vmem:[%s528 + $0xf8] sm:$0xff]
    %s561 = scalar_lea.vmem %s5, 2
    %v562 = vld [vmem:[%s561] sm:$0x3]
    %v564 = vlaneseq
    %v565 = vshrl.u32 %v564, 7
    %v566 = vsub.s32 0, %v565
    %v567 = vrot.slane %v562, %v566
    %v568 = vlaneseq
    %v569 = vshrl.u32 %v568, 7
    %v570 = vsub.s32 1, %v569
    %v571 = vrot.slane %v562, %v570
    %574 = vmatprep.subr.mxu0 %v530
    %575 = vmatpush1.msra.mxu0 %v529
    %576 = vmatprep.subr.mxu0 %v532
    %577 = vmatpush1.msra.mxu0 %v531
    %578 = vmatprep.subr.mxu0 %v534
    %579 = vmatpush1.msra.mxu0 %v533
    %580 = vmatprep.subr.mxu0 %v536
    %581 = vmatpush1.msra.mxu0 %v535
    %582 = vmatprep.subr.mxu0 %v538
    %583 = vmatpush1.msra.mxu0 %v537
    %584 = vmatprep.subr.mxu0 %v540
    %585 = vmatpush1.msra.mxu0 %v539
    %586 = vmatprep.subr.mxu0 %v542
    %587 = vmatpush1.msra.mxu0 %v541
    %588 = vmatprep.subr.mxu0 %v544
    %589 = vmatpush1.msra.mxu0 %v543
    %590 = vmatprep.subr.mxu0 %v546
    %591 = vmatpush1.msra.mxu0 %v545
    %592 = vmatprep.subr.mxu0 %v548
    %593 = vmatpush1.msra.mxu0 %v547
    %594 = vmatprep.subr.mxu0 %v550
    %595 = vmatpush1.msra.mxu0 %v549
    %596 = vmatprep.subr.mxu0 %v552
    %597 = vmatpush1.msra.mxu0 %v551
    %598 = vmatprep.subr.mxu0 %v554
    %599 = vmatpush1.msra.mxu0 %v553
    %600 = vmatprep.subr.mxu0 %v556
    %601 = vmatpush1.msra.mxu0 %v555
    %602 = vmatprep.subr.mxu0 %v558
    %603 = vmatpush1.msra.mxu0 %v557
    %604 = vmatprep.subr.mxu0 %v560
    %605 = vmatpush1.msra.mxu0 %v559
    %606 = vmatprep.subr.mxu0 0.0
    %607 = vmatpush1.msra.mxu0 0.0
    %608 = vmatprep.subr.mxu0 0.0
    %609 = vmatpush1.msra.mxu0 0.0
    %610 = vmatprep.subr.mxu0 0.0
    %611 = vmatpush1.msra.mxu0 0.0
    %612 = vmatprep.subr.mxu0 0.0
    %613 = vmatpush1.msra.mxu0 0.0
    %614 = vmatprep.subr.mxu0 0.0
    %615 = vmatpush1.msra.mxu0 0.0
    %616 = vmatprep.subr.mxu0 0.0
    %617 = vmatpush1.msra.mxu0 0.0
    %618 = vmatprep.subr.mxu0 0.0
    %619 = vmatpush1.msra.mxu0 0.0
    %620 = vmatprep.subr.mxu0 0.0
    %621 = vmatpush1.msra.mxu0 0.0
    %622 = vmatprep.subr.mxu0 0.0
    %623 = vmatpush1.msra.mxu0 0.0
    %624 = vmatprep.subr.mxu0 0.0
    %625 = vmatpush1.msra.mxu0 0.0
    %626 = vmatprep.subr.mxu0 0.0
    %627 = vmatpush1.msra.mxu0 0.0
    %628 = vmatprep.subr.mxu0 0.0
    %629 = vmatpush1.msra.mxu0 0.0
    %630 = vmatprep.subr.mxu0 0.0
    %631 = vmatpush1.msra.mxu0 0.0
    %632 = vmatprep.subr.mxu0 0.0
    %633 = vmatpush1.msra.mxu0 0.0
    %634 = vmatprep.subr.mxu0 0.0
    %635 = vmatpush1.msra.mxu0 0.0
    %636 = vmatprep.subr.mxu0 0.0
    %637 = vmatpush1.msra.mxu0 0.0
    %638 = vmatprep.mubr.f32.mxu0 0.0
    %639 = vmatmul.mubr.f32.gmra.mrb[0].mxu0 %v526
    %v640 = vpop.f32.mrb[0].mxu0
    %v641 = vadd.f32 %v567, %v640
    %v642 = vpop.f32.mrb[0].mxu0
    %v643 = vadd.f32 %v571, %v642
    %644 = vmatprep.mubr.f32.mxu0 0.0
    %645 = vmatmul.mubr.f32.gmra.mrb[0].mxu0 %v527
    %v646 = vpop.f32.mrb[0].mxu0
    %v647 = vadd.f32 %v567, %v646
    %v648 = vpop.f32.mrb[0].mxu0
    %v649 = vadd.f32 %v571, %v648
    %650 = vdwg.mxu0
    %v651 = vmax.f32 %v643, 0.0
    %v652 = vmax.f32 %v649, 0.0
    %v653 = vand.u32 2147483647, %v643
    %v654 = vand.u32 2147483647, %v649
    %v655 = vsub.f32 0.0, %v653
    %v656 = vsub.f32 0.0, %v654
    %v657 = vmul.f32 %v655, 1.442695
    %v658 = vpow.pop %v657
    %v659 = vmul.f32 %v656, 1.442695
    %v660 = vpow.pop %v659
    %v661 = vadd.f32 %v658, 1.0
    %v662 = vlog2.pop %v661
    %v663 = vmul.f32 %v662, 0.6931472
    %v664 = vmul.f32 -0.5, %v658
    %v665 = vadd.f32 %v664, 1.0
    %v666 = vmul.f32 %v665, %v658
    %v667 = vand.u32 2147483647, %v658
    %vm668 = vcmp.lt.f32.partialorder %v667, 0.0004427343
    %v669 = vsel %vm668, %v666, %v663
    %v670 = vadd.f32 %v660, 1.0
    %v671 = vlog2.pop %v670
    %v672 = vmul.f32 %v671, 0.6931472
    %v673 = vmul.f32 -0.5, %v660
    %v674 = vadd.f32 %v673, 1.0
    %v675 = vmul.f32 %v674, %v660
    %v676 = vand.u32 2147483647, %v660
    %vm677 = vcmp.lt.f32.partialorder %v676, 0.0004427343
    %v678 = vsel %vm677, %v675, %v672
    %v679 = vadd.f32 %v651, %v669
    %v680 = vadd.f32 %v652, %v678
    %v681 = vmax.f32 %v679, 0.001
    %v682 = vmax.f32 %v680, 0.001
    %v683 = vmin.f32 %v681, 5.0
    %v684 = vmin.f32 %v682, 5.0
    %s685 = scalar_lea.vmem %s6, 32
    %686 = vst [vmem:[%s685] sm:$0xff] %v641
    %687 = vst [vmem:[%s685 + $0x8] sm:$0xff] %v647
    %s688 = scalar_lea.vmem %s6, 48
    %689 = vst [vmem:[%s688] sm:$0xff] %v683
    %690 = vst [vmem:[%s688 + $0x8] sm:$0xff] %v684
    %s691 = scalar_lea.vmem %s1, 16
    %v692 = vld [vmem:[%s691] sm:$0xff]
    %v693 = vld [vmem:[%s691 + $0x8] sm:$0xff]
    %v694 = vmul.f32 %v692, %v683
    %v695 = vmul.f32 %v693, %v684
    %v696 = vadd.f32 %v694, %v641
    %v697 = vadd.f32 %v695, %v647
    %s698 = scalar_lea.vmem %s0, 32
    %v699 = vld [vmem:[%s698] sm:$0xff]
    %v700 = vld [vmem:[%s698 + $0x8] sm:$0xff]
    %s701 = scalar_lea.vmem [#allocation2], 512
    %v702 = vld [vmem:[%s701] sm:$0xff]
    %v703 = vld [vmem:[%s701 + $0x8] sm:$0xff]
    %v704 = vld [vmem:[%s701 + $0x10] sm:$0xff]
    %v705 = vld [vmem:[%s701 + $0x18] sm:$0xff]
    %v706 = vld [vmem:[%s701 + $0x20] sm:$0xff]
    %v707 = vld [vmem:[%s701 + $0x28] sm:$0xff]
    %v708 = vld [vmem:[%s701 + $0x30] sm:$0xff]
    %v709 = vld [vmem:[%s701 + $0x38] sm:$0xff]
    %v710 = vld [vmem:[%s701 + $0x40] sm:$0xff]
    %v711 = vld [vmem:[%s701 + $0x48] sm:$0xff]
    %v712 = vld [vmem:[%s701 + $0x50] sm:$0xff]
    %v713 = vld [vmem:[%s701 + $0x58] sm:$0xff]
    %v714 = vld [vmem:[%s701 + $0x60] sm:$0xff]
    %v715 = vld [vmem:[%s701 + $0x68] sm:$0xff]
    %v716 = vld [vmem:[%s701 + $0x70] sm:$0xff]
    %v717 = vld [vmem:[%s701 + $0x78] sm:$0xff]
    %s718 = scalar_lea.vmem %s3, 4
    %v719 = vld [vmem:[%s718] sm:$0x1]
    %v721 = vlaneseq
    %v722 = vshrl.u32 %v721, 7
    %v723 = vsub.s32 0, %v722
    %v724 = vrot.slane %v719, %v723
    %726 = vmatprep.subr.mxu0 0.0
    %727 = vmatpush1.msra.mxu0 %v702
    %728 = vmatprep.subr.mxu0 0.0
    %729 = vmatpush1.msra.mxu0 %v703
    %730 = vmatprep.subr.mxu0 0.0
    %731 = vmatpush1.msra.mxu0 %v704
    %732 = vmatprep.subr.mxu0 0.0
    %733 = vmatpush1.msra.mxu0 %v705
    %734 = vmatprep.subr.mxu0 0.0
    %735 = vmatpush1.msra.mxu0 %v706
    %736 = vmatprep.subr.mxu0 0.0
    %737 = vmatpush1.msra.mxu0 %v707
    %738 = vmatprep.subr.mxu0 0.0
    %739 = vmatpush1.msra.mxu0 %v708
    %740 = vmatprep.subr.mxu0 0.0
    %741 = vmatpush1.msra.mxu0 %v709
    %742 = vmatprep.subr.mxu0 0.0
    %743 = vmatpush1.msra.mxu0 %v710
    %744 = vmatprep.subr.mxu0 0.0
    %745 = vmatpush1.msra.mxu0 %v711
    %746 = vmatprep.subr.mxu0 0.0
    %747 = vmatpush1.msra.mxu0 %v712
    %748 = vmatprep.subr.mxu0 0.0
    %749 = vmatpush1.msra.mxu0 %v713
    %750 = vmatprep.subr.mxu0 0.0
    %751 = vmatpush1.msra.mxu0 %v714
    %752 = vmatprep.subr.mxu0 0.0
    %753 = vmatpush1.msra.mxu0 %v715
    %754 = vmatprep.subr.mxu0 0.0
    %755 = vmatpush1.msra.mxu0 %v716
    %756 = vmatprep.subr.mxu0 0.0
    %757 = vmatpush1.msra.mxu0 %v717
    %758 = vmatprep.subr.mxu0 0.0
    %759 = vmatpush1.msra.mxu0 0.0
    %760 = vmatprep.subr.mxu0 0.0
    %761 = vmatpush1.msra.mxu0 0.0
    %762 = vmatprep.subr.mxu0 0.0
    %763 = vmatpush1.msra.mxu0 0.0
    %764 = vmatprep.subr.mxu0 0.0
    %765 = vmatpush1.msra.mxu0 0.0
    %766 = vmatprep.subr.mxu0 0.0
    %767 = vmatpush1.msra.mxu0 0.0
    %768 = vmatprep.subr.mxu0 0.0
    %769 = vmatpush1.msra.mxu0 0.0
    %770 = vmatprep.subr.mxu0 0.0
    %771 = vmatpush1.msra.mxu0 0.0
    %772 = vmatprep.subr.mxu0 0.0
    %773 = vmatpush1.msra.mxu0 0.0
    %774 = vmatprep.subr.mxu0 0.0
    %775 = vmatpush1.msra.mxu0 0.0
    %776 = vmatprep.subr.mxu0 0.0
    %777 = vmatpush1.msra.mxu0 0.0
    %778 = vmatprep.subr.mxu0 0.0
    %779 = vmatpush1.msra.mxu0 0.0
    %780 = vmatprep.subr.mxu0 0.0
    %781 = vmatpush1.msra.mxu0 0.0
    %782 = vmatprep.subr.mxu0 0.0
    %783 = vmatpush1.msra.mxu0 0.0
    %784 = vmatprep.subr.mxu0 0.0
    %785 = vmatpush1.msra.mxu0 0.0
    %786 = vmatprep.subr.mxu0 0.0
    %787 = vmatpush1.msra.mxu0 0.0
    %788 = vmatprep.subr.mxu0 0.0
    %789 = vmatpush1.msra.mxu0 0.0
    %790 = vmatprep.mubr.f32.mxu0 0.0
    %791 = vmatmul.mubr.f32.gmra.mrb[0].mxu0 %v699
    %v792 = vpop.f32.mrb[0].mxu0
    %v793 = vadd.f32 %v724, %v792
    %v794 = vpop.f32.mrb[0].mxu0
    %795 = vmatprep.mubr.f32.mxu0 0.0
    %796 = vmatmul.mubr.f32.gmra.mrb[0].mxu0 %v700
    %v797 = vpop.f32.mrb[0].mxu0
    %v798 = vadd.f32 %v724, %v797
    %v799 = vpop.f32.mrb[0].mxu0
    %800 = vdwg.mxu0
    %v801 = vmax.f32 %v793, 0.0
    %v802 = vmax.f32 %v798, 0.0
    %s803 = scalar_lea.vmem [#allocation2], 640
    %v804 = vld [vmem:[%s803] sm:$0xff]
    %v805 = vld [vmem:[%s803 + $0x8] sm:$0xff]
    %v806 = vld [vmem:[%s803 + $0x10] sm:$0xff]
    %v807 = vld [vmem:[%s803 + $0x18] sm:$0xff]
    %v808 = vld [vmem:[%s803 + $0x20] sm:$0xff]
    %v809 = vld [vmem:[%s803 + $0x28] sm:$0xff]
    %v810 = vld [vmem:[%s803 + $0x30] sm:$0xff]
    %v811 = vld [vmem:[%s803 + $0x38] sm:$0xff]
    %v812 = vld [vmem:[%s803 + $0x40] sm:$0xff]
    %v813 = vld [vmem:[%s803 + $0x48] sm:$0xff]
    %v814 = vld [vmem:[%s803 + $0x50] sm:$0xff]
    %v815 = vld [vmem:[%s803 + $0x58] sm:$0xff]
    %v816 = vld [vmem:[%s803 + $0x60] sm:$0xff]
    %v817 = vld [vmem:[%s803 + $0x68] sm:$0xff]
    %v818 = vld [vmem:[%s803 + $0x70] sm:$0xff]
    %v819 = vld [vmem:[%s803 + $0x78] sm:$0xff]
    %s820 = scalar_lea.vmem %s3, 5
    %v821 = vld [vmem:[%s820] sm:$0x1]
    %v823 = vlaneseq
    %v824 = vshrl.u32 %v823, 7
    %v825 = vsub.s32 0, %v824
    %v826 = vrot.slane %v821, %v825
    %828 = vmatprep.subr.mxu0 0.0
    %829 = vmatpush1.msra.mxu0 %v804
    %830 = vmatprep.subr.mxu0 0.0
    %831 = vmatpush1.msra.mxu0 %v805
    %832 = vmatprep.subr.mxu0 0.0
    %833 = vmatpush1.msra.mxu0 %v806
    %834 = vmatprep.subr.mxu0 0.0
    %835 = vmatpush1.msra.mxu0 %v807
    %836 = vmatprep.subr.mxu0 0.0
    %837 = vmatpush1.msra.mxu0 %v808
    %838 = vmatprep.subr.mxu0 0.0
    %839 = vmatpush1.msra.mxu0 %v809
    %840 = vmatprep.subr.mxu0 0.0
    %841 = vmatpush1.msra.mxu0 %v810
    %842 = vmatprep.subr.mxu0 0.0
    %843 = vmatpush1.msra.mxu0 %v811
    %844 = vmatprep.subr.mxu0 0.0
    %845 = vmatpush1.msra.mxu0 %v812
    %846 = vmatprep.subr.mxu0 0.0
    %847 = vmatpush1.msra.mxu0 %v813
    %848 = vmatprep.subr.mxu0 0.0
    %849 = vmatpush1.msra.mxu0 %v814
    %850 = vmatprep.subr.mxu0 0.0
    %851 = vmatpush1.msra.mxu0 %v815
    %852 = vmatprep.subr.mxu0 0.0
    %853 = vmatpush1.msra.mxu0 %v816
    %854 = vmatprep.subr.mxu0 0.0
    %855 = vmatpush1.msra.mxu0 %v817
    %856 = vmatprep.subr.mxu0 0.0
    %857 = vmatpush1.msra.mxu0 %v818
    %858 = vmatprep.subr.mxu0 0.0
    %859 = vmatpush1.msra.mxu0 %v819
    %860 = vmatprep.subr.mxu0 0.0
    %861 = vmatpush1.msra.mxu0 0.0
    %862 = vmatprep.subr.mxu0 0.0
    %863 = vmatpush1.msra.mxu0 0.0
    %864 = vmatprep.subr.mxu0 0.0
    %865 = vmatpush1.msra.mxu0 0.0
    %866 = vmatprep.subr.mxu0 0.0
    %867 = vmatpush1.msra.mxu0 0.0
    %868 = vmatprep.subr.mxu0 0.0
    %869 = vmatpush1.msra.mxu0 0.0
    %870 = vmatprep.subr.mxu0 0.0
    %871 = vmatpush1.msra.mxu0 0.0
    %872 = vmatprep.subr.mxu0 0.0
    %873 = vmatpush1.msra.mxu0 0.0
    %874 = vmatprep.subr.mxu0 0.0
    %875 = vmatpush1.msra.mxu0 0.0
    %876 = vmatprep.subr.mxu0 0.0
    %877 = vmatpush1.msra.mxu0 0.0
    %878 = vmatprep.subr.mxu0 0.0
    %879 = vmatpush1.msra.mxu0 0.0
    %880 = vmatprep.subr.mxu0 0.0
    %881 = vmatpush1.msra.mxu0 0.0
    %882 = vmatprep.subr.mxu0 0.0
    %883 = vmatpush1.msra.mxu0 0.0
    %884 = vmatprep.subr.mxu0 0.0
    %885 = vmatpush1.msra.mxu0 0.0
    %886 = vmatprep.subr.mxu0 0.0
    %887 = vmatpush1.msra.mxu0 0.0
    %888 = vmatprep.subr.mxu0 0.0
    %889 = vmatpush1.msra.mxu0 0.0
    %890 = vmatprep.subr.mxu0 0.0
    %891 = vmatpush1.msra.mxu0 0.0
    %892 = vmatprep.mubr.f32.mxu0 0.0
    %893 = vmatmul.mubr.f32.gmra.mrb[0].mxu0 %v696
    %v894 = vpop.f32.mrb[0].mxu0
    %v895 = vadd.f32 %v826, %v894
    %v896 = vpop.f32.mrb[0].mxu0
    %897 = vmatprep.mubr.f32.mxu0 0.0
    %898 = vmatmul.mubr.f32.gmra.mrb[0].mxu0 %v697
    %v899 = vpop.f32.mrb[0].mxu0
    %v900 = vadd.f32 %v826, %v899
    %v901 = vpop.f32.mrb[0].mxu0
    %902 = vdwg.mxu0
    %v903 = vmax.f32 %v895, 0.0
    %v904 = vmax.f32 %v900, 0.0
    %v905 = vadd.f32 %v801, %v903
    %v906 = vadd.f32 %v802, %v904
    %s907 = scalar_lea.vmem [#allocation4], 512
    %v908 = vld [vmem:[%s907] sm:$0xff]
    %v909 = vld [vmem:[%s907 + $0x8] sm:$0xff]
    %v910 = vld [vmem:[%s907 + $0x10] sm:$0xff]
    %v911 = vld [vmem:[%s907 + $0x18] sm:$0xff]
    %v912 = vld [vmem:[%s907 + $0x20] sm:$0xff]
    %v913 = vld [vmem:[%s907 + $0x28] sm:$0xff]
    %v914 = vld [vmem:[%s907 + $0x30] sm:$0xff]
    %v915 = vld [vmem:[%s907 + $0x38] sm:$0xff]
    %v916 = vld [vmem:[%s907 + $0x40] sm:$0xff]
    %v917 = vld [vmem:[%s907 + $0x48] sm:$0xff]
    %v918 = vld [vmem:[%s907 + $0x50] sm:$0xff]
    %v919 = vld [vmem:[%s907 + $0x58] sm:$0xff]
    %v920 = vld [vmem:[%s907 + $0x60] sm:$0xff]
    %v921 = vld [vmem:[%s907 + $0x68] sm:$0xff]
    %v922 = vld [vmem:[%s907 + $0x70] sm:$0xff]
    %v923 = vld [vmem:[%s907 + $0x78] sm:$0xff]
    %v924 = vld [vmem:[%s907 + $0x80] sm:$0xff]
    %v925 = vld [vmem:[%s907 + $0x88] sm:$0xff]
    %v926 = vld [vmem:[%s907 + $0x90] sm:$0xff]
    %v927 = vld [vmem:[%s907 + $0x98] sm:$0xff]
    %v928 = vld [vmem:[%s907 + $0xa0] sm:$0xff]
    %v929 = vld [vmem:[%s907 + $0xa8] sm:$0xff]
    %v930 = vld [vmem:[%s907 + $0xb0] sm:$0xff]
    %v931 = vld [vmem:[%s907 + $0xb8] sm:$0xff]
    %v932 = vld [vmem:[%s907 + $0xc0] sm:$0xff]
    %v933 = vld [vmem:[%s907 + $0xc8] sm:$0xff]
    %v934 = vld [vmem:[%s907 + $0xd0] sm:$0xff]
    %v935 = vld [vmem:[%s907 + $0xd8] sm:$0xff]
    %v936 = vld [vmem:[%s907 + $0xe0] sm:$0xff]
    %v937 = vld [vmem:[%s907 + $0xe8] sm:$0xff]
    %v938 = vld [vmem:[%s907 + $0xf0] sm:$0xff]
    %v939 = vld [vmem:[%s907 + $0xf8] sm:$0xff]
    %s940 = scalar_lea.vmem %s5, 4
    %v941 = vld [vmem:[%s940] sm:$0x3]
    %v943 = vlaneseq
    %v944 = vshrl.u32 %v943, 7
    %v945 = vsub.s32 0, %v944
    %v946 = vrot.slane %v941, %v945
    %v947 = vlaneseq
    %v948 = vshrl.u32 %v947, 7
    %v949 = vsub.s32 1, %v948
    %v950 = vrot.slane %v941, %v949
    %953 = vmatprep.subr.mxu0 %v909
    %954 = vmatpush1.msra.mxu0 %v908
    %955 = vmatprep.subr.mxu0 %v911
    %956 = vmatpush1.msra.mxu0 %v910
    %957 = vmatprep.subr.mxu0 %v913
    %958 = vmatpush1.msra.mxu0 %v912
    %959 = vmatprep.subr.mxu0 %v915
    %960 = vmatpush1.msra.mxu0 %v914
    %961 = vmatprep.subr.mxu0 %v917
    %962 = vmatpush1.msra.mxu0 %v916
    %963 = vmatprep.subr.mxu0 %v919
    %964 = vmatpush1.msra.mxu0 %v918
    %965 = vmatprep.subr.mxu0 %v921
    %966 = vmatpush1.msra.mxu0 %v920
    %967 = vmatprep.subr.mxu0 %v923
    %968 = vmatpush1.msra.mxu0 %v922
    %969 = vmatprep.subr.mxu0 %v925
    %970 = vmatpush1.msra.mxu0 %v924
    %971 = vmatprep.subr.mxu0 %v927
    %972 = vmatpush1.msra.mxu0 %v926
    %973 = vmatprep.subr.mxu0 %v929
    %974 = vmatpush1.msra.mxu0 %v928
    %975 = vmatprep.subr.mxu0 %v931
    %976 = vmatpush1.msra.mxu0 %v930
    %977 = vmatprep.subr.mxu0 %v933
    %978 = vmatpush1.msra.mxu0 %v932
    %979 = vmatprep.subr.mxu0 %v935
    %980 = vmatpush1.msra.mxu0 %v934
    %981 = vmatprep.subr.mxu0 %v937
    %982 = vmatpush1.msra.mxu0 %v936
    %983 = vmatprep.subr.mxu0 %v939
    %984 = vmatpush1.msra.mxu0 %v938
    %985 = vmatprep.subr.mxu0 0.0
    %986 = vmatpush1.msra.mxu0 0.0
    %987 = vmatprep.subr.mxu0 0.0
    %988 = vmatpush1.msra.mxu0 0.0
    %989 = vmatprep.subr.mxu0 0.0
    %990 = vmatpush1.msra.mxu0 0.0
    %991 = vmatprep.subr.mxu0 0.0
    %992 = vmatpush1.msra.mxu0 0.0
    %993 = vmatprep.subr.mxu0 0.0
    %994 = vmatpush1.msra.mxu0 0.0
    %995 = vmatprep.subr.mxu0 0.0
    %996 = vmatpush1.msra.mxu0 0.0
    %997 = vmatprep.subr.mxu0 0.0
    %998 = vmatpush1.msra.mxu0 0.0
    %999 = vmatprep.subr.mxu0 0.0
    %1000 = vmatpush1.msra.mxu0 0.0
    %1001 = vmatprep.subr.mxu0 0.0
    %1002 = vmatpush1.msra.mxu0 0.0
    %1003 = vmatprep.subr.mxu0 0.0
    %1004 = vmatpush1.msra.mxu0 0.0
    %1005 = vmatprep.subr.mxu0 0.0
    %1006 = vmatpush1.msra.mxu0 0.0
    %1007 = vmatprep.subr.mxu0 0.0
    %1008 = vmatpush1.msra.mxu0 0.0
    %1009 = vmatprep.subr.mxu0 0.0
    %1010 = vmatpush1.msra.mxu0 0.0
    %1011 = vmatprep.subr.mxu0 0.0
    %1012 = vmatpush1.msra.mxu0 0.0
    %1013 = vmatprep.subr.mxu0 0.0
    %1014 = vmatpush1.msra.mxu0 0.0
    %1015 = vmatprep.subr.mxu0 0.0
    %1016 = vmatpush1.msra.mxu0 0.0
    %1017 = vmatprep.mubr.f32.mxu0 0.0
    %1018 = vmatmul.mubr.f32.gmra.mrb[0].mxu0 %v905
    %v1019 = vpop.f32.mrb[0].mxu0
    %v1020 = vadd.f32 %v946, %v1019
    %v1021 = vpop.f32.mrb[0].mxu0
    %v1022 = vadd.f32 %v950, %v1021
    %1023 = vmatprep.mubr.f32.mxu0 0.0
    %1024 = vmatmul.mubr.f32.gmra.mrb[0].mxu0 %v906
    %v1025 = vpop.f32.mrb[0].mxu0
    %v1026 = vadd.f32 %v946, %v1025
    %v1027 = vpop.f32.mrb[0].mxu0
    %v1028 = vadd.f32 %v950, %v1027
    %1029 = vdwg.mxu0
    %v1030 = vmax.f32 %v1022, 0.0
    %v1031 = vmax.f32 %v1028, 0.0
    %v1032 = vand.u32 2147483647, %v1022
    %v1033 = vand.u32 2147483647, %v1028
    %v1034 = vsub.f32 0.0, %v1032
    %v1035 = vsub.f32 0.0, %v1033
    %v1036 = vmul.f32 %v1034, 1.442695
    %v1037 = vpow.pop %v1036
    %v1038 = vmul.f32 %v1035, 1.442695
    %v1039 = vpow.pop %v1038
    %v1040 = vadd.f32 %v1037, 1.0
    %v1041 = vlog2.pop %v1040
    %v1042 = vmul.f32 %v1041, 0.6931472
    %v1043 = vmul.f32 -0.5, %v1037
    %v1044 = vadd.f32 %v1043, 1.0
    %v1045 = vmul.f32 %v1044, %v1037
    %v1046 = vand.u32 2147483647, %v1037
    %vm1047 = vcmp.lt.f32.partialorder %v1046, 0.0004427343
    %v1048 = vsel %vm1047, %v1045, %v1042
    %v1049 = vadd.f32 %v1039, 1.0
    %v1050 = vlog2.pop %v1049
    %v1051 = vmul.f32 %v1050, 0.6931472
    %v1052 = vmul.f32 -0.5, %v1039
    %v1053 = vadd.f32 %v1052, 1.0
    %v1054 = vmul.f32 %v1053, %v1039
    %v1055 = vand.u32 2147483647, %v1039
    %vm1056 = vcmp.lt.f32.partialorder %v1055, 0.0004427343
    %v1057 = vsel %vm1056, %v1054, %v1051
    %v1058 = vadd.f32 %v1030, %v1048
    %v1059 = vadd.f32 %v1031, %v1057
    %v1060 = vmax.f32 %v1058, 0.001
    %v1061 = vmax.f32 %v1059, 0.001
    %v1062 = vmin.f32 %v1060, 5.0
    %v1063 = vmin.f32 %v1061, 5.0
    %s1064 = scalar_lea.vmem %s6, 64
    %1065 = vst [vmem:[%s1064] sm:$0xff] %v1020
    %1066 = vst [vmem:[%s1064 + $0x8] sm:$0xff] %v1026
    %s1067 = scalar_lea.vmem %s6, 80
    %1068 = vst [vmem:[%s1067] sm:$0xff] %v1062
    %1069 = vst [vmem:[%s1067 + $0x8] sm:$0xff] %v1063
    // Predicated region
    $region34: #{inference_network_forward.1} parent=1 // pred_check
      _
    $region35: #{inference_network_forward.1} parent=1 // pred_check_branch
      %1071 = sbr.rel (0) target = $region37
    $region36: #{inference_network_forward.1} parent=1 // pred_region
      _
    $region37: #{inference_network_forward.1} parent=1 // pred_fallthru
      _
    // Predicated region
    $region38: #{inference_network_forward.1} parent=1 // pred_check
      _
    $region39: #{inference_network_forward.1} parent=1 // pred_check_branch
      %1073 = sbr.rel (0) target = $region41
    $region40: #{inference_network_forward.1} parent=1 // pred_region
      _
    $region41: #{inference_network_forward.1} parent=1 // pred_fallthru
      _
    %1074 = vsyncpa [#allocation3], 1
    %1075 = vsyncpa [#allocation5], 1

</llo_original>
